<compile_context>
chip_gen: v7x
topology: tpu7x:2x2x1
jax: 0.10.0
libtpu: 0.0.40
codegen_flags: <defaults>
</compile_context>

<pallas_src>
import functools

import jax
import jax.numpy as jnp
from jax import lax
from jax.experimental import pallas as pl
from jax.experimental.pallas import tpu as pltpu


def _down_kernel(x_ref, w1_ref, b1_ref, w2_ref, b2_ref, o_ref, xp1_ref, xp2_ref,
                 *, bt, hh, wh, pad_top):
    # x_ref  : (bt, 4, Mimg, Cin)  bf16  -- 2x2 pooling-window parity slabs, pixel-row layout
    # w1_ref : (9*Cin, Cmid)       bf16  -- HWIO flattened, BN1 scale folded in
    # b1_ref : (1, Cmid)           f32   -- folded BN1 bias
    # w2_ref : (9*Cmid, Cout)      bf16  -- HWIO flattened, BN2 scale folded in
    # b2_ref : (1, Cout)           f32   -- folded BN2 bias
    # o_ref  : (Cout, bt*Mimg)     f32   -- transposed (lane-dense) output block
    # xp1_ref: (bt, R, Cin)        bf16  -- row-padded flat-pixel input of conv1
    # xp2_ref: (bt, R, Cmid)       bf16  -- row-padded flat-pixel input of conv2
    m_img = hh * wh
    cin = x_ref.shape[3]
    cmid = w1_ref.shape[1]
    r_total = 2 * pad_top + m_img

    # ---- zero halo rows (top/bottom pad_top rows); interior is overwritten below ----
    z1 = jnp.zeros((bt, pad_top, cin), xp1_ref.dtype)
    xp1_ref[:, 0:pad_top, :] = z1
    xp1_ref[:, pad_top + m_img:r_total, :] = z1
    z2 = jnp.zeros((bt, pad_top, cmid), xp2_ref.dtype)
    xp2_ref[:, 0:pad_top, :] = z2
    xp2_ref[:, pad_top + m_img:r_total, :] = z2

    # ---------------- MaxPool2d(2, 2): elementwise max over 4 parity slabs (VPU) ----------------
    pooled = jnp.max(x_ref[...], axis=1)                       # (bt, Mimg, Cin) bf16
    xp1_ref[:, pad_top:pad_top + m_img, :] = pooled

    # Column masks killing the horizontal wrap-around of the flat pixel-row shifts
    # (w==0 rows for the dx=0 taps, w==Wh-1 rows for the dx=2 taps).
    w_idx = lax.broadcasted_iota(jnp.int32, (1, m_img, 1), 1) % wh
    not_left = w_idx != 0
    not_right = w_idx != (wh - 1)

    def conv3x3_bn_relu(xp_ref, w, b, c):
        # Single MXU matmul with K = 9*c: every tap is a constant row-shift of
        # the padded flat-pixel image; shifted slabs are concatenated along
        # lanes to form the im2col patch (no 3-D window slicing / reshaping).
        slabs = []
        for dy in range(3):
            for dx in range(3):
                start = pad_top + (dy - 1) * wh + (dx - 1)
                s = xp_ref[:, start:start + m_img, :]          # (bt, Mimg, c)
                if dx == 0:
                    s = jnp.where(not_left, s, jnp.zeros((), s.dtype))
                elif dx == 2:
                    s = jnp.where(not_right, s, jnp.zeros((), s.dtype))
                slabs.append(s)
        patch = jnp.concatenate(slabs, axis=-1)                # (bt, Mimg, 9*c)
        patch = patch.reshape(bt * m_img, 9 * c)               # leading-dim merge (layout-free)
        acc = jnp.dot(patch, w, preferred_element_type=jnp.float32)
        return jnp.maximum(acc + b, 0.0)                       # f32 (bt*Mimg, c_out)

    # -------- Conv1 + folded BN1 + ReLU --------
    y1 = conv3x3_bn_relu(xp1_ref, w1_ref[...], b1_ref[...], cin)          # (bt*Mimg, Cmid)
    xp2_ref[:, pad_top:pad_top + m_img, :] = (
        y1.astype(xp2_ref.dtype).reshape(bt, m_img, cmid))

    # -------- Conv2 + folded BN2 + ReLU --------
    y2 = conv3x3_bn_relu(xp2_ref, w2_ref[...], b2_ref[...], cmid)         # (bt*Mimg, Cout)

    # Lane-dense store: last dim is the flat pixel axis (multiple of 128 rows of work).
    o_ref[...] = jnp.transpose(y2, (1, 0)).astype(o_ref.dtype)


def fold_bn(gamma, beta, mean, var, eps=1e-5):
    scale = gamma / jnp.sqrt(var + eps)
    bias = beta - mean * scale
    return scale, bias


def _pick_batch_tile(n, m_img, max_rows=1024):
    # Smallest batch tile that divides N, gives the MXU M-dim >= 128 rows and
    # keeps the output block lane width a multiple of 128 when grid > 1.
    for bt in range(1, n + 1):
        if n % bt:
            continue
        m = bt * m_img
        if m >= 128 and m <= max_rows and (m % 128 == 0 or bt == n):
            return bt
    return n


def down_pallas(x_nchw, w1_oihw, bn1, w2_oihw, bn2):
    N, Cin, H, W = x_nchw.shape
    Cmid = w1_oihw.shape[0]
    Cout = w2_oihw.shape[0]
    assert H % 2 == 0 and W % 2 == 0, "MaxPool2d(2,2) path assumes even H and W"
    Hh, Wh = H // 2, W // 2
    Mimg = Hh * Wh

    bt = _pick_batch_tile(N, Mimg)
    pad_top = ((Wh + 1 + 7) // 8) * 8          # sublane-aligned zero-row halo (>= Wh+1)
    R = 2 * pad_top + Mimg

    # 2x2 pooling-window parity slabs in flat-pixel-row layout:
    #   x_pool[n, hp*2+wp, h*Wh+w, c] = x[n, c, 2h+hp, 2w+wp]     (bf16)
    x = jnp.transpose(x_nchw, (0, 2, 3, 1)).astype(jnp.bfloat16)     # NHWC
    x = x.reshape(N, Hh, 2, Wh, 2, Cin)
    x = jnp.transpose(x, (0, 2, 4, 1, 3, 5)).reshape(N, 4, Mimg, Cin)

    # HWIO weights, eval-mode BN scale folded in, flattened to (9*C, Cout), bf16.
    s1, b1 = fold_bn(*bn1)
    s2, b2 = fold_bn(*bn2)
    w1 = (jnp.transpose(w1_oihw, (2, 3, 1, 0)).astype(jnp.float32)
          * s1.reshape(1, 1, 1, Cmid)).reshape(9 * Cin, Cmid).astype(jnp.bfloat16)
    w2 = (jnp.transpose(w2_oihw, (2, 3, 1, 0)).astype(jnp.float32)
          * s2.reshape(1, 1, 1, Cout)).reshape(9 * Cmid, Cout).astype(jnp.bfloat16)
    b1 = b1.reshape(1, Cmid).astype(jnp.float32)
    b2 = b2.reshape(1, Cout).astype(jnp.float32)

    kernel = functools.partial(_down_kernel, bt=bt, hh=Hh, wh=Wh, pad_top=pad_top)

    out = pl.pallas_call(
        kernel,
        out_shape=jax.ShapeDtypeStruct((Cout, N * Mimg), jnp.float32),
        grid_spec=pltpu.PrefetchScalarGridSpec(
            num_scalar_prefetch=0,
            grid=(N // bt,),
            in_specs=[
                pl.BlockSpec((bt, 4, Mimg, Cin), lambda n: (n, 0, 0, 0)),
                pl.BlockSpec((9 * Cin, Cmid), lambda n: (0, 0)),
                pl.BlockSpec((1, Cmid), lambda n: (0, 0)),
                pl.BlockSpec((9 * Cmid, Cout), lambda n: (0, 0)),
                pl.BlockSpec((1, Cout), lambda n: (0, 0)),
            ],
            out_specs=pl.BlockSpec((Cout, bt * Mimg), lambda n: (0, n)),
            scratch_shapes=[
                pltpu.VMEM((bt, R, Cin), jnp.bfloat16),    # row-padded conv1 input
                pltpu.VMEM((bt, R, Cmid), jnp.bfloat16),   # row-padded conv2 input
            ],
        ),
        compiler_params=pltpu.CompilerParams(
            dimension_semantics=("parallel",),
            vmem_limit_bytes=32 * 1024 * 1024),
    )(x, w1, b1, w2, b2)

    # Free layout plumbing back to NCHW.
    out = out.reshape(Cout, N, Hh, Wh)
    return jnp.transpose(out, (1, 0, 2, 3))


def down_reference(x_nchw, w1_oihw, bn1, w2_oihw, bn2):
    """Pure-JAX reference.  Activations/weights are rounded to bf16 exactly like
    the kernel (accumulation stays f32), so only f32 summation order differs."""
    x = jnp.transpose(x_nchw, (0, 2, 3, 1)).astype(jnp.float32)
    y = lax.reduce_window(x, -jnp.inf, lax.max, (1, 2, 2, 1), (1, 2, 2, 1), "VALID")

    def conv_bn_relu(y, w_oihw, bn):
        s, b = fold_bn(*bn)
        w = jnp.transpose(w_oihw, (2, 3, 1, 0)).astype(jnp.float32) * s.reshape(1, 1, 1, -1)
        wq = w.astype(jnp.bfloat16).astype(jnp.float32)
        yq = y.astype(jnp.bfloat16).astype(jnp.float32)
        y = lax.conv_general_dilated(yq, wq, (1, 1), "SAME",
                                     dimension_numbers=("NHWC", "HWIO", "NHWC"))
        return jnp.maximum(y + b.reshape(1, 1, 1, -1), 0.0)

    y = conv_bn_relu(y, w1_oihw, bn1)
    y = conv_bn_relu(y, w2_oihw, bn2)
    return jnp.transpose(y, (0, 3, 1, 2))


if __name__ == "__main__":
    key = jax.random.PRNGKey(0)
    ks = jax.random.split(key, 12)

    N, Cin, H, W = 2, 4, 16, 16
    Cmid, Cout = 8, 8   # Down(in_chann=4, out_chann=8)

    x = jax.random.normal(ks[0], (N, Cin, H, W), jnp.float32)

    # Conv weights (PyTorch OIHW layout), no bias.
    w1 = 0.2 * jax.random.normal(ks[1], (Cmid, Cin, 3, 3), jnp.float32)
    w2 = 0.2 * jax.random.normal(ks[2], (Cout, Cmid, 3, 3), jnp.float32)

    # BatchNorm (eval-mode) parameters: gamma, beta, running_mean, running_var.
    bn1 = (jax.random.uniform(ks[3], (Cmid,), jnp.float32, 0.5, 1.5),
           0.1 * jax.random.normal(ks[4], (Cmid,), jnp.float32),
           0.1 * jax.random.normal(ks[5], (Cmid,), jnp.float32),
           jax.random.uniform(ks[6], (Cmid,), jnp.float32, 0.5, 1.5))
    bn2 = (jax.random.uniform(ks[7], (Cout,), jnp.float32, 0.5, 1.5),
           0.1 * jax.random.normal(ks[8], (Cout,), jnp.float32),
           0.1 * jax.random.normal(ks[9], (Cout,), jnp.float32),
           jax.random.uniform(ks[10], (Cout,), jnp.float32, 0.5, 1.5))

    out = jax.block_until_ready(down_pallas(x, w1, bn1, w2, bn2))
    ref = jax.block_until_ready(down_reference(x, w1, bn1, w2, bn2))

    max_err = float(jnp.max(jnp.abs(out - ref)))
    assert out.shape == (N, Cout, H // 2, W // 2), out.shape
    assert max_err < 5e-3, f"mismatch vs reference: max_err={max_err}"

    print("KERNEL_OK")
</pallas_src>

<mosaic_0001>
module attributes {stable_mosaic.version = 11 : i64} {
  func.func @_down_kernel(%arg0: i32, %arg1: memref<2x4x64x4xbf16, #tpu.memory_space<vmem>>, %arg2: memref<36x8xbf16, #tpu.memory_space<vmem>>, %arg3: memref<1x8xf32, #tpu.memory_space<vmem>>, %arg4: memref<72x8xbf16, #tpu.memory_space<vmem>>, %arg5: memref<1x8xf32, #tpu.memory_space<vmem>>, %arg6: memref<8x128xf32, #tpu.memory_space<vmem>>, %arg7: memref<2x96x4xbf16, #tpu.memory_space<vmem>>, %arg8: memref<2x96x8xbf16, #tpu.memory_space<vmem>>) attributes {dimension_semantics = [#tpu.dimension_semantics<parallel>], iteration_bounds = array<i64: 1>, scalar_prefetch = 0 : i64, scratch_operands = 2 : i64, tpu.core_type = #tpu.core_type<tc>, window_params = [{transform_indices = @transform_0, window_bounds = array<i64: 2, 4, 64, 4>}, {pipeline_mode = #tpu.pipeline_mode<synchronous>, transform_indices = @transform_1, window_bounds = array<i64: 36, 8>}, {pipeline_mode = #tpu.pipeline_mode<synchronous>, transform_indices = @transform_2, window_bounds = array<i64: 1, 8>}, {pipeline_mode = #tpu.pipeline_mode<synchronous>, transform_indices = @transform_3, window_bounds = array<i64: 72, 8>}, {pipeline_mode = #tpu.pipeline_mode<synchronous>, transform_indices = @transform_4, window_bounds = array<i64: 1, 8>}, {transform_indices = @transform_5, window_bounds = array<i64: 8, 128>}]} {
    %cst = arith.constant 0.000000e+00 : bf16
    %0 = vector.broadcast %cst : bf16 to vector<2x16x4xbf16>
    %c0 = arith.constant 0 : index
    %c0_0 = arith.constant 0 : index
    %c0_1 = arith.constant 0 : index
    %1 = vector.load %arg7[%c0, %c0_0, %c0_1] : memref<2x96x4xbf16, #tpu.memory_space<vmem>>, vector<2x16x4xbf16>
    tpu.vector_store %arg7[%c0, %c0_0, %c0_1], %0 {strides = array<i32>} : memref<2x96x4xbf16, #tpu.memory_space<vmem>>, vector<2x16x4xbf16>,
    %c0_2 = arith.constant 0 : index
    %c80 = arith.constant 80 : index
    %c0_3 = arith.constant 0 : index
    %2 = vector.load %arg7[%c0_2, %c80, %c0_3] : memref<2x96x4xbf16, #tpu.memory_space<vmem>>, vector<2x16x4xbf16>
    tpu.vector_store %arg7[%c0_2, %c80, %c0_3], %0 {strides = array<i32>} : memref<2x96x4xbf16, #tpu.memory_space<vmem>>, vector<2x16x4xbf16>,
    %cst_4 = arith.constant 0.000000e+00 : bf16
    %3 = vector.broadcast %cst_4 : bf16 to vector<2x16x8xbf16>
    %c0_5 = arith.constant 0 : index
    %c0_6 = arith.constant 0 : index
    %c0_7 = arith.constant 0 : index
    %4 = vector.load %arg8[%c0_5, %c0_6, %c0_7] : memref<2x96x8xbf16, #tpu.memory_space<vmem>>, vector<2x16x8xbf16>
    tpu.vector_store %arg8[%c0_5, %c0_6, %c0_7], %3 {strides = array<i32>} : memref<2x96x8xbf16, #tpu.memory_space<vmem>>, vector<2x16x8xbf16>,
    %c0_8 = arith.constant 0 : index
    %c80_9 = arith.constant 80 : index
    %c0_10 = arith.constant 0 : index
    %5 = vector.load %arg8[%c0_8, %c80_9, %c0_10] : memref<2x96x8xbf16, #tpu.memory_space<vmem>>, vector<2x16x8xbf16>
    tpu.vector_store %arg8[%c0_8, %c80_9, %c0_10], %3 {strides = array<i32>} : memref<2x96x8xbf16, #tpu.memory_space<vmem>>, vector<2x16x8xbf16>,
    %c0_11 = arith.constant 0 : index
    %c0_12 = arith.constant 0 : index
    %c0_13 = arith.constant 0 : index
    %c0_14 = arith.constant 0 : index
    %6 = vector.load %arg1[%c0_11, %c0_12, %c0_13, %c0_14] : memref<2x4x64x4xbf16, #tpu.memory_space<vmem>>, vector<2x4x64x4xbf16>
    %cst_15 = arith.constant dense<0xFF80> : vector<2x64x4xbf16>
    %7 = vector.multi_reduction <maximumf>, %6, %cst_15 [1] : vector<2x4x64x4xbf16> to vector<2x64x4xbf16>
    %c0_16 = arith.constant 0 : index
    %c16 = arith.constant 16 : index
    %c0_17 = arith.constant 0 : index
    %8 = vector.load %arg7[%c0_16, %c16, %c0_17] : memref<2x96x4xbf16, #tpu.memory_space<vmem>>, vector<2x64x4xbf16>
    tpu.vector_store %arg7[%c0_16, %c16, %c0_17], %7 {strides = array<i32>} : memref<2x96x4xbf16, #tpu.memory_space<vmem>>, vector<2x64x4xbf16>,
    %9 = tpu.iota {dimensions = array<i32: 1>} : vector<1x64x1xi32>
    %c8_i32 = arith.constant 8 : i32
    %c0_i32 = arith.constant 0 : i32
    %10 = arith.cmpi eq, %c8_i32, %c0_i32 : i32
    %c1_i32 = arith.constant 1 : i32
    %11 = arith.select %10, %c1_i32, %c8_i32 : i32
    %12 = vector.broadcast %11 : i32 to vector<1x64x1xi32>
    %13 = arith.remsi %9, %12 : vector<1x64x1xi32>
    %c0_i32_18 = arith.constant 0 : i32
    %14 = vector.broadcast %c0_i32_18 : i32 to vector<1x64x1xi32>
    %15 = arith.cmpi ne, %13, %14 : vector<1x64x1xi32>
    %c0_i32_19 = arith.constant 0 : i32
    %16 = vector.broadcast %c0_i32_19 : i32 to vector<1x64x1xi32>
    %17 = arith.cmpi slt, %13, %16 : vector<1x64x1xi32>
    %c0_i32_20 = arith.constant 0 : i32
    %18 = arith.cmpi slt, %11, %c0_i32_20 : i32
    %19 = vector.broadcast %18 : i1 to vector<1x64x1xi1>
    %20 = vector.broadcast %19 : vector<1x64x1xi1> to vector<1x64x1xi1>
    %21 = arith.xori %17, %20 : vector<1x64x1xi1>
    %22 = arith.andi %21, %15 : vector<1x64x1xi1>
    %23 = vector.broadcast %11 : i32 to vector<1x64x1xi32>
    %24 = arith.addi %13, %23 : vector<1x64x1xi32>
    %25 = arith.select %22, %24, %13 : vector<1x64x1xi1>, vector<1x64x1xi32>
    %c0_i32_21 = arith.constant 0 : i32
    %26 = vector.broadcast %c0_i32_21 : i32 to vector<1x64x1xi32>
    %27 = arith.cmpi ne, %25, %26 : vector<1x64x1xi32>
    %c7_i32 = arith.constant 7 : i32
    %28 = vector.broadcast %c7_i32 : i32 to vector<1x64x1xi32>
    %29 = arith.cmpi ne, %25, %28 : vector<1x64x1xi32>
    %c0_22 = arith.constant 0 : index
    %c0_23 = arith.constant 0 : index
    %30 = vector.load %arg2[%c0_22, %c0_23] : memref<36x8xbf16, #tpu.memory_space<vmem>>, vector<36x8xbf16>
    %c0_24 = arith.constant 0 : index
    %c0_25 = arith.constant 0 : index
    %31 = vector.load %arg3[%c0_24, %c0_25] : memref<1x8xf32, #tpu.memory_space<vmem>>, vector<1x8xf32>
    %c0_26 = arith.constant 0 : index
    %c7 = arith.constant 7 : index
    %c0_27 = arith.constant 0 : index
    %32 = vector.load %arg7[%c0_26, %c7, %c0_27] : memref<2x96x4xbf16, #tpu.memory_space<vmem>>, vector<2x64x4xbf16>
    %cst_28 = arith.constant 0.000000e+00 : bf16
    %33 = vector.shape_cast %27 : vector<1x64x1xi1> to vector<1x64x1xi1>
    %34 = vector.broadcast %33 : vector<1x64x1xi1> to vector<2x64x4xi1>
    %35 = vector.broadcast %cst_28 : bf16 to vector<2x64x4xbf16>
    %36 = arith.select %34, %32, %35 : vector<2x64x4xi1>, vector<2x64x4xbf16>
    %c0_29 = arith.constant 0 : index
    %c8 = arith.constant 8 : index
    %c0_30 = arith.constant 0 : index
    %37 = vector.load %arg7[%c0_29, %c8, %c0_30] : memref<2x96x4xbf16, #tpu.memory_space<vmem>>, vector<2x64x4xbf16>
    %c0_31 = arith.constant 0 : index
    %c9 = arith.constant 9 : index
    %c0_32 = arith.constant 0 : index
    %38 = vector.load %arg7[%c0_31, %c9, %c0_32] : memref<2x96x4xbf16, #tpu.memory_space<vmem>>, vector<2x64x4xbf16>
    %cst_33 = arith.constant 0.000000e+00 : bf16
    %39 = vector.shape_cast %29 : vector<1x64x1xi1> to vector<1x64x1xi1>
    %40 = vector.broadcast %39 : vector<1x64x1xi1> to vector<2x64x4xi1>
    %41 = vector.broadcast %cst_33 : bf16 to vector<2x64x4xbf16>
    %42 = arith.select %40, %38, %41 : vector<2x64x4xi1>, vector<2x64x4xbf16>
    %c0_34 = arith.constant 0 : index
    %c15 = arith.constant 15 : index
    %c0_35 = arith.constant 0 : index
    %43 = vector.load %arg7[%c0_34, %c15, %c0_35] : memref<2x96x4xbf16, #tpu.memory_space<vmem>>, vector<2x64x4xbf16>
    %cst_36 = arith.constant 0.000000e+00 : bf16
    %44 = vector.shape_cast %27 : vector<1x64x1xi1> to vector<1x64x1xi1>
    %45 = vector.broadcast %44 : vector<1x64x1xi1> to vector<2x64x4xi1>
    %46 = vector.broadcast %cst_36 : bf16 to vector<2x64x4xbf16>
    %47 = arith.select %45, %43, %46 : vector<2x64x4xi1>, vector<2x64x4xbf16>
    %c0_37 = arith.constant 0 : index
    %c16_38 = arith.constant 16 : index
    %c0_39 = arith.constant 0 : index
    %48 = vector.load %arg7[%c0_37, %c16_38, %c0_39] : memref<2x96x4xbf16, #tpu.memory_space<vmem>>, vector<2x64x4xbf16>
    %c0_40 = arith.constant 0 : index
    %c17 = arith.constant 17 : index
    %c0_41 = arith.constant 0 : index
    %49 = vector.load %arg7[%c0_40, %c17, %c0_41] : memref<2x96x4xbf16, #tpu.memory_space<vmem>>, vector<2x64x4xbf16>
    %cst_42 = arith.constant 0.000000e+00 : bf16
    %50 = vector.shape_cast %29 : vector<1x64x1xi1> to vector<1x64x1xi1>
    %51 = vector.broadcast %50 : vector<1x64x1xi1> to vector<2x64x4xi1>
    %52 = vector.broadcast %cst_42 : bf16 to vector<2x64x4xbf16>
    %53 = arith.select %51, %49, %52 : vector<2x64x4xi1>, vector<2x64x4xbf16>
    %c0_43 = arith.constant 0 : index
    %c23 = arith.constant 23 : index
    %c0_44 = arith.constant 0 : index
    %54 = vector.load %arg7[%c0_43, %c23, %c0_44] : memref<2x96x4xbf16, #tpu.memory_space<vmem>>, vector<2x64x4xbf16>
    %cst_45 = arith.constant 0.000000e+00 : bf16
    %55 = vector.shape_cast %27 : vector<1x64x1xi1> to vector<1x64x1xi1>
    %56 = vector.broadcast %55 : vector<1x64x1xi1> to vector<2x64x4xi1>
    %57 = vector.broadcast %cst_45 : bf16 to vector<2x64x4xbf16>
    %58 = arith.select %56, %54, %57 : vector<2x64x4xi1>, vector<2x64x4xbf16>
    %c0_46 = arith.constant 0 : index
    %c24 = arith.constant 24 : index
    %c0_47 = arith.constant 0 : index
    %59 = vector.load %arg7[%c0_46, %c24, %c0_47] : memref<2x96x4xbf16, #tpu.memory_space<vmem>>, vector<2x64x4xbf16>
    %c0_48 = arith.constant 0 : index
    %c25 = arith.constant 25 : index
    %c0_49 = arith.constant 0 : index
    %60 = vector.load %arg7[%c0_48, %c25, %c0_49] : memref<2x96x4xbf16, #tpu.memory_space<vmem>>, vector<2x64x4xbf16>
    %cst_50 = arith.constant 0.000000e+00 : bf16
    %61 = vector.shape_cast %29 : vector<1x64x1xi1> to vector<1x64x1xi1>
    %62 = vector.broadcast %61 : vector<1x64x1xi1> to vector<2x64x4xi1>
    %63 = vector.broadcast %cst_50 : bf16 to vector<2x64x4xbf16>
    %64 = arith.select %62, %60, %63 : vector<2x64x4xi1>, vector<2x64x4xbf16>
    %65 = tpu.concatenate %36, %37, %42, %47, %48, %53, %58, %59, %64 in 2 : vector<2x64x4xbf16>, vector<2x64x4xbf16>, vector<2x64x4xbf16>, vector<2x64x4xbf16>, vector<2x64x4xbf16>, vector<2x64x4xbf16>, vector<2x64x4xbf16>, vector<2x64x4xbf16>, vector<2x64x4xbf16> -> vector<2x64x36xbf16>
    %66 = vector.shape_cast %65 : vector<2x64x36xbf16> to vector<128x36xbf16>
    %cst_51 = arith.constant dense<0.000000e+00> : vector<128x8xf32>
    %67 = tpu.matmul %66, %30, %cst_51 {dimension_numbers = #tpu.dot_dimension_numbers<[1], [0], [0], [1], [0, 0, 1, 1], [], []>} : vector<128x36xbf16>, vector<36x8xbf16>, vector<128x8xf32> -> vector<128x8xf32>
    %68 = vector.broadcast %31 : vector<1x8xf32> to vector<128x8xf32>
    %69 = arith.addf %67, %68 : vector<128x8xf32>
    %cst_52 = arith.constant 0.000000e+00 : f32
    %70 = vector.broadcast %cst_52 : f32 to vector<128x8xf32>
    %71 = arith.maximumf %69, %70 : vector<128x8xf32>
    %72 = arith.truncf %71 : vector<128x8xf32> to vector<128x8xbf16>
    %73 = vector.shape_cast %72 : vector<128x8xbf16> to vector<2x64x8xbf16>
    %c0_53 = arith.constant 0 : index
    %c16_54 = arith.constant 16 : index
    %c0_55 = arith.constant 0 : index
    %74 = vector.load %arg8[%c0_53, %c16_54, %c0_55] : memref<2x96x8xbf16, #tpu.memory_space<vmem>>, vector<2x64x8xbf16>
    tpu.vector_store %arg8[%c0_53, %c16_54, %c0_55], %73 {strides = array<i32>} : memref<2x96x8xbf16, #tpu.memory_space<vmem>>, vector<2x64x8xbf16>,
    %c0_56 = arith.constant 0 : index
    %c0_57 = arith.constant 0 : index
    %75 = vector.load %arg4[%c0_56, %c0_57] : memref<72x8xbf16, #tpu.memory_space<vmem>>, vector<72x8xbf16>
    %c0_58 = arith.constant 0 : index
    %c0_59 = arith.constant 0 : index
    %76 = vector.load %arg5[%c0_58, %c0_59] : memref<1x8xf32, #tpu.memory_space<vmem>>, vector<1x8xf32>
    %c0_60 = arith.constant 0 : index
    %c7_61 = arith.constant 7 : index
    %c0_62 = arith.constant 0 : index
    %77 = vector.load %arg8[%c0_60, %c7_61, %c0_62] : memref<2x96x8xbf16, #tpu.memory_space<vmem>>, vector<2x64x8xbf16>
    %cst_63 = arith.constant 0.000000e+00 : bf16
    %78 = vector.shape_cast %27 : vector<1x64x1xi1> to vector<1x64x1xi1>
    %79 = vector.broadcast %78 : vector<1x64x1xi1> to vector<2x64x8xi1>
    %80 = vector.broadcast %cst_63 : bf16 to vector<2x64x8xbf16>
    %81 = arith.select %79, %77, %80 : vector<2x64x8xi1>, vector<2x64x8xbf16>
    %c0_64 = arith.constant 0 : index
    %c8_65 = arith.constant 8 : index
    %c0_66 = arith.constant 0 : index
    %82 = vector.load %arg8[%c0_64, %c8_65, %c0_66] : memref<2x96x8xbf16, #tpu.memory_space<vmem>>, vector<2x64x8xbf16>
    %c0_67 = arith.constant 0 : index
    %c9_68 = arith.constant 9 : index
    %c0_69 = arith.constant 0 : index
    %83 = vector.load %arg8[%c0_67, %c9_68, %c0_69] : memref<2x96x8xbf16, #tpu.memory_space<vmem>>, vector<2x64x8xbf16>
    %cst_70 = arith.constant 0.000000e+00 : bf16
    %84 = vector.shape_cast %29 : vector<1x64x1xi1> to vector<1x64x1xi1>
    %85 = vector.broadcast %84 : vector<1x64x1xi1> to vector<2x64x8xi1>
    %86 = vector.broadcast %cst_70 : bf16 to vector<2x64x8xbf16>
    %87 = arith.select %85, %83, %86 : vector<2x64x8xi1>, vector<2x64x8xbf16>
    %c0_71 = arith.constant 0 : index
    %c15_72 = arith.constant 15 : index
    %c0_73 = arith.constant 0 : index
    %88 = vector.load %arg8[%c0_71, %c15_72, %c0_73] : memref<2x96x8xbf16, #tpu.memory_space<vmem>>, vector<2x64x8xbf16>
    %cst_74 = arith.constant 0.000000e+00 : bf16
    %89 = vector.shape_cast %27 : vector<1x64x1xi1> to vector<1x64x1xi1>
    %90 = vector.broadcast %89 : vector<1x64x1xi1> to vector<2x64x8xi1>
    %91 = vector.broadcast %cst_74 : bf16 to vector<2x64x8xbf16>
    %92 = arith.select %90, %88, %91 : vector<2x64x8xi1>, vector<2x64x8xbf16>
    %c0_75 = arith.constant 0 : index
    %c16_76 = arith.constant 16 : index
    %c0_77 = arith.constant 0 : index
    %93 = vector.load %arg8[%c0_75, %c16_76, %c0_77] : memref<2x96x8xbf16, #tpu.memory_space<vmem>>, vector<2x64x8xbf16>
    %c0_78 = arith.constant 0 : index
    %c17_79 = arith.constant 17 : index
    %c0_80 = arith.constant 0 : index
    %94 = vector.load %arg8[%c0_78, %c17_79, %c0_80] : memref<2x96x8xbf16, #tpu.memory_space<vmem>>, vector<2x64x8xbf16>
    %cst_81 = arith.constant 0.000000e+00 : bf16
    %95 = vector.shape_cast %29 : vector<1x64x1xi1> to vector<1x64x1xi1>
    %96 = vector.broadcast %95 : vector<1x64x1xi1> to vector<2x64x8xi1>
    %97 = vector.broadcast %cst_81 : bf16 to vector<2x64x8xbf16>
    %98 = arith.select %96, %94, %97 : vector<2x64x8xi1>, vector<2x64x8xbf16>
    %c0_82 = arith.constant 0 : index
    %c23_83 = arith.constant 23 : index
    %c0_84 = arith.constant 0 : index
    %99 = vector.load %arg8[%c0_82, %c23_83, %c0_84] : memref<2x96x8xbf16, #tpu.memory_space<vmem>>, vector<2x64x8xbf16>
    %cst_85 = arith.constant 0.000000e+00 : bf16
    %100 = vector.shape_cast %27 : vector<1x64x1xi1> to vector<1x64x1xi1>
    %101 = vector.broadcast %100 : vector<1x64x1xi1> to vector<2x64x8xi1>
    %102 = vector.broadcast %cst_85 : bf16 to vector<2x64x8xbf16>
    %103 = arith.select %101, %99, %102 : vector<2x64x8xi1>, vector<2x64x8xbf16>
    %c0_86 = arith.constant 0 : index
    %c24_87 = arith.constant 24 : index
    %c0_88 = arith.constant 0 : index
    %104 = vector.load %arg8[%c0_86, %c24_87, %c0_88] : memref<2x96x8xbf16, #tpu.memory_space<vmem>>, vector<2x64x8xbf16>
    %c0_89 = arith.constant 0 : index
    %c25_90 = arith.constant 25 : index
    %c0_91 = arith.constant 0 : index
    %105 = vector.load %arg8[%c0_89, %c25_90, %c0_91] : memref<2x96x8xbf16, #tpu.memory_space<vmem>>, vector<2x64x8xbf16>
    %cst_92 = arith.constant 0.000000e+00 : bf16
    %106 = vector.shape_cast %29 : vector<1x64x1xi1> to vector<1x64x1xi1>
    %107 = vector.broadcast %106 : vector<1x64x1xi1> to vector<2x64x8xi1>
    %108 = vector.broadcast %cst_92 : bf16 to vector<2x64x8xbf16>
    %109 = arith.select %107, %105, %108 : vector<2x64x8xi1>, vector<2x64x8xbf16>
    %110 = tpu.concatenate %81, %82, %87, %92, %93, %98, %103, %104, %109 in 2 : vector<2x64x8xbf16>, vector<2x64x8xbf16>, vector<2x64x8xbf16>, vector<2x64x8xbf16>, vector<2x64x8xbf16>, vector<2x64x8xbf16>, vector<2x64x8xbf16>, vector<2x64x8xbf16>, vector<2x64x8xbf16> -> vector<2x64x72xbf16>
    %111 = vector.shape_cast %110 : vector<2x64x72xbf16> to vector<128x72xbf16>
    %cst_93 = arith.constant dense<0.000000e+00> : vector<128x8xf32>
    %112 = tpu.matmul %111, %75, %cst_93 {dimension_numbers = #tpu.dot_dimension_numbers<[1], [0], [0], [1], [0, 0, 1, 1], [], []>} : vector<128x72xbf16>, vector<72x8xbf16>, vector<128x8xf32> -> vector<128x8xf32>
    %113 = vector.broadcast %76 : vector<1x8xf32> to vector<128x8xf32>
    %114 = arith.addf %112, %113 : vector<128x8xf32>
    %cst_94 = arith.constant 0.000000e+00 : f32
    %115 = vector.broadcast %cst_94 : f32 to vector<128x8xf32>
    %116 = arith.maximumf %114, %115 : vector<128x8xf32>
    %117 = tpu.transpose %116, [1, 0] : vector<128x8xf32> -> vector<8x128xf32>
    %c0_95 = arith.constant 0 : index
    %c0_96 = arith.constant 0 : index
    %118 = vector.load %arg6[%c0_95, %c0_96] : memref<8x128xf32, #tpu.memory_space<vmem>>, vector<8x128xf32>
    tpu.vector_store %arg6[%c0_95, %c0_96], %117 {strides = array<i32>} : memref<8x128xf32, #tpu.memory_space<vmem>>, vector<8x128xf32>,
    return
  }
  func.func @transform_0(%arg0: i32) -> (i32, i32, i32, i32) {
    %c0_i32 = arith.constant 0 : i32
    %c0_i32_0 = arith.constant 0 : i32
    %c0_i32_1 = arith.constant 0 : i32
    %c0_i32_2 = arith.constant 0 : i32
    return %arg0, %c0_i32, %c0_i32_0, %c0_i32_1 : i32, i32, i32, i32
  }
  func.func @transform_1(%arg0: i32) -> (i32, i32) {
    %c0_i32 = arith.constant 0 : i32
    %c0_i32_0 = arith.constant 0 : i32
    %c0_i32_1 = arith.constant 0 : i32
    return %c0_i32, %c0_i32_0 : i32, i32
  }
  func.func @transform_2(%arg0: i32) -> (i32, i32) {
    %c0_i32 = arith.constant 0 : i32
    %c0_i32_0 = arith.constant 0 : i32
    %c0_i32_1 = arith.constant 0 : i32
    return %c0_i32, %c0_i32_0 : i32, i32
  }
  func.func @transform_3(%arg0: i32) -> (i32, i32) {
    %c0_i32 = arith.constant 0 : i32
    %c0_i32_0 = arith.constant 0 : i32
    %c0_i32_1 = arith.constant 0 : i32
    return %c0_i32, %c0_i32_0 : i32, i32
  }
  func.func @transform_4(%arg0: i32) -> (i32, i32) {
    %c0_i32 = arith.constant 0 : i32
    %c0_i32_0 = arith.constant 0 : i32
    %c0_i32_1 = arith.constant 0 : i32
    return %c0_i32, %c0_i32_0 : i32, i32
  }
  func.func @transform_5(%arg0: i32) -> (i32, i32) {
    %c0_i32 = arith.constant 0 : i32
    %c0_i32_0 = arith.constant 0 : i32
    return %c0_i32, %arg0 : i32, i32
  }
}

</mosaic_0001>

<llo_original>
// kernel: tpu_custom_call.1
$region0: #{tpu_custom_call.1}
  #allocation0 [shape = 'u32[]', space=smem, size = 0x4, offset = 0x4, fixed_abs, tag = 'smem constant byte address 0x4 - core index']
  #allocation1 [shape = 'u32[144,128]{1,0:T(1,128)}', space=vmem, size = 0x12000, scoped, tag = 'internal scratch']
  #allocation2 [shape = 'bf16[2,96,4]{2,1,0:T(16,128)(2,1)}', space=vmem, size = 0xc000, scoped, tag = 'scratch operand']
  #allocation3 [shape = 'bf16[2,96,8]{2,1,0:T(16,128)(2,1)}', space=vmem, size = 0xc000, scoped, tag = 'scratch operand']
  %s0 = inlined_call_operand.vmem [shape: bf16[2,4,64,4], index: 0, kind: input, shape index: {}]
  %s1 = inlined_call_operand.vmem [shape: bf16[36,8], index: 1, kind: input, shape index: {}]
  %s2 = inlined_call_operand.vmem [shape: f32[1,8], index: 2, kind: input, shape index: {}]
  %s3 = inlined_call_operand.vmem [shape: bf16[72,8], index: 3, kind: input, shape index: {}]
  %s4 = inlined_call_operand.vmem [shape: f32[1,8], index: 4, kind: input, shape index: {}]
  %s5 = inlined_call_operand.hbm [shape: f32[8,128], index: 5, kind: output, shape index: {}]
  %s6 = sld [smem:[#allocation0]]
  $region30: #{tpu_custom_call.1} parent=0
    _
  %s8 = ssub.s32 1, %s6
  %s9 = scalar_select 0, %s8, %s6
  $region1: #{tpu_custom_call.1} parent=0
    #allocation4 [shape = 'u8[4096]{0}', space=vmem, size = 0x1000, scoped, tag = 'output window, operand 0, single buffered']
    #allocation5 [shape = 's32[1]{0}', space=sflag, size = 0x4, scoped, tag = 'scoped memory for tpu_custom_call.1']
    %10 = vsyncpa [#allocation5], 0
    // Predicated region
    $region2: #{tpu_custom_call.1} parent=1 // pred_check
      _
    $region3: #{tpu_custom_call.1} parent=1 // pred_check_branch
      %12 = sbr.rel (0) target = $region5
    $region4: #{tpu_custom_call.1} parent=1 // pred_region
      _
    $region5: #{tpu_custom_call.1} parent=1 // pred_fallthru
      _
    // Predicated region
    $region6: #{tpu_custom_call.1} parent=1 // pred_check
      _
    $region7: #{tpu_custom_call.1} parent=1 // pred_check_branch
      %14 = sbr.rel (0) target = $region9
    $region8: #{tpu_custom_call.1} parent=1 // pred_region
      _
    $region9: #{tpu_custom_call.1} parent=1 // pred_fallthru
      _
    // Predicated region
    $region10: #{tpu_custom_call.1} parent=1 // pred_check
      _
    $region11: #{tpu_custom_call.1} parent=1 // pred_check_branch
      %16 = sbr.rel (0) target = $region13
    $region12: #{tpu_custom_call.1} parent=1 // pred_region
      _
    $region13: #{tpu_custom_call.1} parent=1 // pred_fallthru
      _
    // Predicated region
    $region14: #{tpu_custom_call.1} parent=1 // pred_check
      _
    $region15: #{tpu_custom_call.1} parent=1 // pred_check_branch
      %18 = sbr.rel (0) target = $region17
    $region16: #{tpu_custom_call.1} parent=1 // pred_region
      _
    $region17: #{tpu_custom_call.1} parent=1 // pred_fallthru
      _
    // Predicated region
    $region18: #{tpu_custom_call.1} parent=1 // pred_check
      _
    $region19: #{tpu_custom_call.1} parent=1 // pred_check_branch
      %20 = sbr.rel (0) target = $region21
    $region20: #{tpu_custom_call.1} parent=1 // pred_region
      _
    $region21: #{tpu_custom_call.1} parent=1 // pred_fallthru
      _
    %vm25 = vcmask 31744
    %26 = vst.msk [vmem:[#allocation2] sm:$0xff] %vm25, 0
    %27 = vst.msk [vmem:[#allocation2 + $0x30] sm:$0xff] %vm25, 0
    %28 = vst.msk [vmem:[#allocation2 + $0x28] sm:$0xff] %vm25, 0
    %29 = vst.msk [vmem:[#allocation2 + $0x58] sm:$0xff] %vm25, 0
    %vm30 = vcmask 64512
    %31 = vst.msk [vmem:[#allocation3] sm:$0xff] %vm30, 0
    %32 = vst.msk [vmem:[#allocation3 + $0x30] sm:$0xff] %vm30, 0
    %33 = vst.msk [vmem:[#allocation3 + $0x28] sm:$0xff] %vm30, 0
    %34 = vst.msk [vmem:[#allocation3 + $0x58] sm:$0xff] %vm30, 0
    %v35 = vld [vmem:[%s0] sm:$0xf]
    %v36 = vld [vmem:[%s0 + $0x4] sm:$0xf]
    %v37 = vld [vmem:[%s0 + $0x8] sm:$0xf]
    %v38 = vld [vmem:[%s0 + $0xc] sm:$0xf]
    %v39 = vld [vmem:[%s0 + $0x10] sm:$0xf]
    %v40 = vld [vmem:[%s0 + $0x14] sm:$0xf]
    %v41 = vld [vmem:[%s0 + $0x18] sm:$0xf]
    %v42 = vld [vmem:[%s0 + $0x1c] sm:$0xf]
    %v43 = vld [vmem:[%s0 + $0x20] sm:$0xf]
    %v44 = vld [vmem:[%s0 + $0x24] sm:$0xf]
    %v45 = vld [vmem:[%s0 + $0x28] sm:$0xf]
    %v46 = vld [vmem:[%s0 + $0x2c] sm:$0xf]
    %v47 = vld [vmem:[%s0 + $0x30] sm:$0xf]
    %v48 = vld [vmem:[%s0 + $0x34] sm:$0xf]
    %v49 = vld [vmem:[%s0 + $0x38] sm:$0xf]
    %v50 = vld [vmem:[%s0 + $0x3c] sm:$0xf]
    %v51 = vld [vmem:[%s0 + $0x40] sm:$0xf]
    %v52 = vld [vmem:[%s0 + $0x44] sm:$0xf]
    %v53 = vld [vmem:[%s0 + $0x48] sm:$0xf]
    %v54 = vld [vmem:[%s0 + $0x4c] sm:$0xf]
    %v55 = vld [vmem:[%s0 + $0x50] sm:$0xf]
    %v56 = vld [vmem:[%s0 + $0x54] sm:$0xf]
    %v57 = vld [vmem:[%s0 + $0x58] sm:$0xf]
    %v58 = vld [vmem:[%s0 + $0x5c] sm:$0xf]
    %v59 = vld [vmem:[%s0 + $0x60] sm:$0xf]
    %v60 = vld [vmem:[%s0 + $0x64] sm:$0xf]
    %v61 = vld [vmem:[%s0 + $0x68] sm:$0xf]
    %v62 = vld [vmem:[%s0 + $0x6c] sm:$0xf]
    %v63 = vld [vmem:[%s0 + $0x70] sm:$0xf]
    %v64 = vld [vmem:[%s0 + $0x74] sm:$0xf]
    %v65 = vld [vmem:[%s0 + $0x78] sm:$0xf]
    %v66 = vld [vmem:[%s0 + $0x7c] sm:$0xf]
    %v67 = vld [vmem:[%s0 + $0x80] sm:$0xf]
    %v68 = vld [vmem:[%s0 + $0x84] sm:$0xf]
    %v69 = vld [vmem:[%s0 + $0x88] sm:$0xf]
    %v70 = vld [vmem:[%s0 + $0x8c] sm:$0xf]
    %v71 = vld [vmem:[%s0 + $0x90] sm:$0xf]
    %v72 = vld [vmem:[%s0 + $0x94] sm:$0xf]
    %v73 = vld [vmem:[%s0 + $0x98] sm:$0xf]
    %v74 = vld [vmem:[%s0 + $0x9c] sm:$0xf]
    %v75 = vld [vmem:[%s0 + $0xa0] sm:$0xf]
    %v76 = vld [vmem:[%s0 + $0xa4] sm:$0xf]
    %v77 = vld [vmem:[%s0 + $0xa8] sm:$0xf]
    %v78 = vld [vmem:[%s0 + $0xac] sm:$0xf]
    %v79 = vld [vmem:[%s0 + $0xb0] sm:$0xf]
    %v80 = vld [vmem:[%s0 + $0xb4] sm:$0xf]
    %v81 = vld [vmem:[%s0 + $0xb8] sm:$0xf]
    %v82 = vld [vmem:[%s0 + $0xbc] sm:$0xf]
    %v83 = vld [vmem:[%s0 + $0xc0] sm:$0xf]
    %v84 = vld [vmem:[%s0 + $0xc4] sm:$0xf]
    %v85 = vld [vmem:[%s0 + $0xc8] sm:$0xf]
    %v86 = vld [vmem:[%s0 + $0xcc] sm:$0xf]
    %v87 = vld [vmem:[%s0 + $0xd0] sm:$0xf]
    %v88 = vld [vmem:[%s0 + $0xd4] sm:$0xf]
    %v89 = vld [vmem:[%s0 + $0xd8] sm:$0xf]
    %v90 = vld [vmem:[%s0 + $0xdc] sm:$0xf]
    %v91 = vld [vmem:[%s0 + $0xe0] sm:$0xf]
    %v92 = vld [vmem:[%s0 + $0xe4] sm:$0xf]
    %v93 = vld [vmem:[%s0 + $0xe8] sm:$0xf]
    %v94 = vld [vmem:[%s0 + $0xec] sm:$0xf]
    %v95 = vld [vmem:[%s0 + $0xf0] sm:$0xf]
    %v96 = vld [vmem:[%s0 + $0xf4] sm:$0xf]
    %v97 = vld [vmem:[%s0 + $0xf8] sm:$0xf]
    %v98 = vld [vmem:[%s0 + $0xfc] sm:$0xf]
    %vm99 = vcmask 27648
    %v102 = vsel %vm99, %v35, 4286644096
    %v105 = vsel %vm99, %v43, 4286644096
    %v107 = vmax.bf16 %v102, %v105
    %v109 = vsel %vm99, %v51, 4286644096
    %v111 = vmax.bf16 %v107, %v109
    %v113 = vsel %vm99, %v59, 4286644096
    %v115 = vmax.bf16 %v111, %v113
    %v117 = vsel %vm99, %v36, 4286644096
    %v120 = vsel %vm99, %v44, 4286644096
    %v122 = vmax.bf16 %v117, %v120
    %v124 = vsel %vm99, %v52, 4286644096
    %v126 = vmax.bf16 %v122, %v124
    %v128 = vsel %vm99, %v60, 4286644096
    %v130 = vmax.bf16 %v126, %v128
    %v132 = vsel %vm99, %v37, 4286644096
    %v135 = vsel %vm99, %v45, 4286644096
    %v137 = vmax.bf16 %v132, %v135
    %v139 = vsel %vm99, %v53, 4286644096
    %v141 = vmax.bf16 %v137, %v139
    %v143 = vsel %vm99, %v61, 4286644096
    %v145 = vmax.bf16 %v141, %v143
    %v147 = vsel %vm99, %v38, 4286644096
    %v150 = vsel %vm99, %v46, 4286644096
    %v152 = vmax.bf16 %v147, %v150
    %v154 = vsel %vm99, %v54, 4286644096
    %v156 = vmax.bf16 %v152, %v154
    %v158 = vsel %vm99, %v62, 4286644096
    %v160 = vmax.bf16 %v156, %v158
    %v162 = vsel %vm99, %v39, 4286644096
    %v165 = vsel %vm99, %v47, 4286644096
    %v167 = vmax.bf16 %v162, %v165
    %v169 = vsel %vm99, %v55, 4286644096
    %v171 = vmax.bf16 %v167, %v169
    %v173 = vsel %vm99, %v63, 4286644096
    %v175 = vmax.bf16 %v171, %v173
    %v177 = vsel %vm99, %v40, 4286644096
    %v180 = vsel %vm99, %v48, 4286644096
    %v182 = vmax.bf16 %v177, %v180
    %v184 = vsel %vm99, %v56, 4286644096
    %v186 = vmax.bf16 %v182, %v184
    %v188 = vsel %vm99, %v64, 4286644096
    %v190 = vmax.bf16 %v186, %v188
    %v192 = vsel %vm99, %v41, 4286644096
    %v195 = vsel %vm99, %v49, 4286644096
    %v197 = vmax.bf16 %v192, %v195
    %v199 = vsel %vm99, %v57, 4286644096
    %v201 = vmax.bf16 %v197, %v199
    %v203 = vsel %vm99, %v65, 4286644096
    %v205 = vmax.bf16 %v201, %v203
    %v207 = vsel %vm99, %v42, 4286644096
    %v210 = vsel %vm99, %v50, 4286644096
    %v212 = vmax.bf16 %v207, %v210
    %v214 = vsel %vm99, %v58, 4286644096
    %v216 = vmax.bf16 %v212, %v214
    %v218 = vsel %vm99, %v66, 4286644096
    %v220 = vmax.bf16 %v216, %v218
    %v222 = vsel %vm99, %v67, 4286644096
    %v225 = vsel %vm99, %v75, 4286644096
    %v227 = vmax.bf16 %v222, %v225
    %v229 = vsel %vm99, %v83, 4286644096
    %v231 = vmax.bf16 %v227, %v229
    %v233 = vsel %vm99, %v91, 4286644096
    %v235 = vmax.bf16 %v231, %v233
    %v237 = vsel %vm99, %v68, 4286644096
    %v240 = vsel %vm99, %v76, 4286644096
    %v242 = vmax.bf16 %v237, %v240
    %v244 = vsel %vm99, %v84, 4286644096
    %v246 = vmax.bf16 %v242, %v244
    %v248 = vsel %vm99, %v92, 4286644096
    %v250 = vmax.bf16 %v246, %v248
    %v252 = vsel %vm99, %v69, 4286644096
    %v255 = vsel %vm99, %v77, 4286644096
    %v257 = vmax.bf16 %v252, %v255
    %v259 = vsel %vm99, %v85, 4286644096
    %v261 = vmax.bf16 %v257, %v259
    %v263 = vsel %vm99, %v93, 4286644096
    %v265 = vmax.bf16 %v261, %v263
    %v267 = vsel %vm99, %v70, 4286644096
    %v270 = vsel %vm99, %v78, 4286644096
    %v272 = vmax.bf16 %v267, %v270
    %v274 = vsel %vm99, %v86, 4286644096
    %v276 = vmax.bf16 %v272, %v274
    %v278 = vsel %vm99, %v94, 4286644096
    %v280 = vmax.bf16 %v276, %v278
    %v282 = vsel %vm99, %v71, 4286644096
    %v285 = vsel %vm99, %v79, 4286644096
    %v287 = vmax.bf16 %v282, %v285
    %v289 = vsel %vm99, %v87, 4286644096
    %v291 = vmax.bf16 %v287, %v289
    %v293 = vsel %vm99, %v95, 4286644096
    %v295 = vmax.bf16 %v291, %v293
    %v297 = vsel %vm99, %v72, 4286644096
    %v300 = vsel %vm99, %v80, 4286644096
    %v302 = vmax.bf16 %v297, %v300
    %v304 = vsel %vm99, %v88, 4286644096
    %v306 = vmax.bf16 %v302, %v304
    %v308 = vsel %vm99, %v96, 4286644096
    %v310 = vmax.bf16 %v306, %v308
    %v312 = vsel %vm99, %v73, 4286644096
    %v315 = vsel %vm99, %v81, 4286644096
    %v317 = vmax.bf16 %v312, %v315
    %v319 = vsel %vm99, %v89, 4286644096
    %v321 = vmax.bf16 %v317, %v319
    %v323 = vsel %vm99, %v97, 4286644096
    %v325 = vmax.bf16 %v321, %v323
    %v327 = vsel %vm99, %v74, 4286644096
    %v330 = vsel %vm99, %v82, 4286644096
    %v332 = vmax.bf16 %v327, %v330
    %v334 = vsel %vm99, %v90, 4286644096
    %v336 = vmax.bf16 %v332, %v334
    %v338 = vsel %vm99, %v98, 4286644096
    %v340 = vmax.bf16 %v336, %v338
    %v357 = vunpack.c.l.b16 %v115
    %v358 = vunpack.c.l.b16 %v130
    %v359 = vunpack.c.l.b16 %v145
    %v360 = vunpack.c.l.b16 %v160
    %v361 = vunpack.c.l.b16 %v175
    %v362 = vunpack.c.l.b16 %v190
    %v363 = vunpack.c.l.b16 %v205
    %v364 = vunpack.c.l.b16 %v220
    %v365 = vunpack.c.l.b16 %v235
    %v366 = vunpack.c.l.b16 %v250
    %v367 = vunpack.c.l.b16 %v265
    %v368 = vunpack.c.l.b16 %v280
    %v369 = vunpack.c.l.b16 %v295
    %v370 = vunpack.c.l.b16 %v310
    %v371 = vunpack.c.l.b16 %v325
    %v372 = vunpack.c.l.b16 %v340
    %v373 = vpack.c.b16 %v358, %v357
    %v374 = vpack.c.b16 %v360, %v359
    %v375 = vpack.c.b16 %v362, %v361
    %v376 = vpack.c.b16 %v364, %v363
    %v377 = vpack.c.b16 %v366, %v365
    %v378 = vpack.c.b16 %v368, %v367
    %v379 = vpack.c.b16 %v370, %v369
    %v380 = vpack.c.b16 %v372, %v371
    %389 = vst.msk [vmem:[#allocation2 + $0x8] sm:$0xff] %vm25, %v373
    %390 = vst.msk [vmem:[#allocation2 + $0x10] sm:$0xff] %vm25, %v374
    %391 = vst.msk [vmem:[#allocation2 + $0x18] sm:$0xff] %vm25, %v375
    %392 = vst.msk [vmem:[#allocation2 + $0x20] sm:$0xff] %vm25, %v376
    %393 = vst.msk [vmem:[#allocation2 + $0x38] sm:$0xff] %vm25, %v377
    %394 = vst.msk [vmem:[#allocation2 + $0x40] sm:$0xff] %vm25, %v378
    %395 = vst.msk [vmem:[#allocation2 + $0x48] sm:$0xff] %vm25, %v379
    %396 = vst.msk [vmem:[#allocation2 + $0x50] sm:$0xff] %vm25, %v380
    %v397 = vlaneseq
    %v398 = vshrl.u32 %v397, 7
    %v399 = vadd.s32 %v398, 8
    %v400 = vadd.s32 %v398, 16
    %v401 = vadd.s32 %v398, 24
    %v402 = vadd.s32 %v398, 32
    %v403 = vadd.s32 %v398, 40
    %v404 = vadd.s32 %v398, 48
    %v405 = vadd.s32 %v398, 56
    %vm406 = vcmp.lt.s32.totalorder %v398, 0
    %v407 = vsub.s32 0, %v398
    %v408 = vsel %vm406, %v407, %v398
    %v409 = vshrl.u32 %v408, 3
    %v410 = vand.u32 %v408, 7
    %v411 = vsub.s32 0, %v410
    %v412 = vsel %vm406, %v411, %v410
    %vm413 = vcmp.lt.s32.totalorder %v399, 0
    %v414 = vsub.s32 0, %v399
    %v415 = vsel %vm413, %v414, %v399
    %v416 = vshrl.u32 %v415, 3
    %v417 = vand.u32 %v415, 7
    %v418 = vsub.s32 0, %v417
    %v419 = vsel %vm413, %v418, %v417
    %vm420 = vcmp.lt.s32.totalorder %v400, 0
    %v421 = vsub.s32 0, %v400
    %v422 = vsel %vm420, %v421, %v400
    %v423 = vshrl.u32 %v422, 3
    %v424 = vand.u32 %v422, 7
    %v425 = vsub.s32 0, %v424
    %v426 = vsel %vm420, %v425, %v424
    %vm427 = vcmp.lt.s32.totalorder %v401, 0
    %v428 = vsub.s32 0, %v401
    %v429 = vsel %vm427, %v428, %v401
    %v430 = vshrl.u32 %v429, 3
    %v431 = vand.u32 %v429, 7
    %v432 = vsub.s32 0, %v431
    %v433 = vsel %vm427, %v432, %v431
    %vm434 = vcmp.lt.s32.totalorder %v402, 0
    %v435 = vsub.s32 0, %v402
    %v436 = vsel %vm434, %v435, %v402
    %v437 = vshrl.u32 %v436, 3
    %v438 = vand.u32 %v436, 7
    %v439 = vsub.s32 0, %v438
    %v440 = vsel %vm434, %v439, %v438
    %vm441 = vcmp.lt.s32.totalorder %v403, 0
    %v442 = vsub.s32 0, %v403
    %v443 = vsel %vm441, %v442, %v403
    %v444 = vshrl.u32 %v443, 3
    %v445 = vand.u32 %v443, 7
    %v446 = vsub.s32 0, %v445
    %v447 = vsel %vm441, %v446, %v445
    %vm448 = vcmp.lt.s32.totalorder %v404, 0
    %v449 = vsub.s32 0, %v404
    %v450 = vsel %vm448, %v449, %v404
    %v451 = vshrl.u32 %v450, 3
    %v452 = vand.u32 %v450, 7
    %v453 = vsub.s32 0, %v452
    %v454 = vsel %vm448, %v453, %v452
    %vm455 = vcmp.lt.s32.totalorder %v405, 0
    %v456 = vsub.s32 0, %v405
    %v457 = vsel %vm455, %v456, %v405
    %v458 = vshrl.u32 %v457, 3
    %v459 = vand.u32 %v457, 7
    %v460 = vsub.s32 0, %v459
    %v461 = vsel %vm455, %v460, %v459
    %vm462 = vcmp.ne.s32.totalorder %v412, 0
    %vm463 = vcmp.ne.s32.totalorder %v419, 0
    %vm464 = vcmp.ne.s32.totalorder %v426, 0
    %vm465 = vcmp.ne.s32.totalorder %v433, 0
    %vm466 = vcmp.ne.s32.totalorder %v440, 0
    %vm467 = vcmp.ne.s32.totalorder %v447, 0
    %vm468 = vcmp.ne.s32.totalorder %v454, 0
    %vm469 = vcmp.ne.s32.totalorder %v461, 0
    %vm470 = vcmp.lt.s32.totalorder %v412, 0
    %vm471 = vcmp.lt.s32.totalorder %v419, 0
    %vm472 = vcmp.lt.s32.totalorder %v426, 0
    %vm473 = vcmp.lt.s32.totalorder %v433, 0
    %vm474 = vcmp.lt.s32.totalorder %v440, 0
    %vm475 = vcmp.lt.s32.totalorder %v447, 0
    %vm476 = vcmp.lt.s32.totalorder %v454, 0
    %vm477 = vcmp.lt.s32.totalorder %v461, 0
    %vm478 = vmand %vm470, %vm462
    %vm479 = vmand %vm471, %vm463
    %vm480 = vmand %vm472, %vm464
    %vm481 = vmand %vm473, %vm465
    %vm482 = vmand %vm474, %vm466
    %vm483 = vmand %vm475, %vm467
    %vm484 = vmand %vm476, %vm468
    %vm485 = vmand %vm477, %vm469
    %v486 = vadd.s32 %v412, 8
    %v487 = vadd.s32 %v419, 8
    %v488 = vadd.s32 %v426, 8
    %v489 = vadd.s32 %v433, 8
    %v490 = vadd.s32 %v440, 8
    %v491 = vadd.s32 %v447, 8
    %v492 = vadd.s32 %v454, 8
    %v493 = vadd.s32 %v461, 8
    %v494 = vsel %vm478, %v486, %v412
    %v495 = vsel %vm479, %v487, %v419
    %v496 = vsel %vm480, %v488, %v426
    %v497 = vsel %vm481, %v489, %v433
    %v498 = vsel %vm482, %v490, %v440
    %v499 = vsel %vm483, %v491, %v447
    %v500 = vsel %vm484, %v492, %v454
    %v501 = vsel %vm485, %v493, %v461
    %vm502 = vcmp.ne.s32.totalorder %v494, 0
    %vm503 = vcmp.ne.s32.totalorder %v495, 0
    %vm504 = vcmp.ne.s32.totalorder %v496, 0
    %vm505 = vcmp.ne.s32.totalorder %v497, 0
    %vm506 = vcmp.ne.s32.totalorder %v498, 0
    %vm507 = vcmp.ne.s32.totalorder %v499, 0
    %vm508 = vcmp.ne.s32.totalorder %v500, 0
    %vm509 = vcmp.ne.s32.totalorder %v501, 0
    %vm510 = vcmp.ne.s32.totalorder %v494, 7
    %vm511 = vcmp.ne.s32.totalorder %v495, 7
    %vm512 = vcmp.ne.s32.totalorder %v496, 7
    %vm513 = vcmp.ne.s32.totalorder %v497, 7
    %vm514 = vcmp.ne.s32.totalorder %v498, 7
    %vm515 = vcmp.ne.s32.totalorder %v499, 7
    %vm516 = vcmp.ne.s32.totalorder %v500, 7
    %vm517 = vcmp.ne.s32.totalorder %v501, 7
    %v518 = vld [vmem:[%s1] sm:$0xf]
    %v519 = vld [vmem:[%s1 + $0x4] sm:$0xf]
    %v520 = vld [vmem:[%s1 + $0x8] sm:$0xf]
    %v521 = vld [vmem:[%s1 + $0xc] sm:$0xf]
    %v522 = vld [vmem:[%s1 + $0x10] sm:$0x3]
    %v523 = vld [vmem:[%s2] sm:$0x1]
    %v524 = vld [vmem:[#allocation2] sm:$0xf8]
    %v525 = vld [vmem:[#allocation2 + $0x8] sm:$0xff]
    %v526 = vld [vmem:[#allocation2 + $0x10] sm:$0xff]
    %v527 = vld [vmem:[#allocation2 + $0x18] sm:$0xff]
    %v528 = vld [vmem:[#allocation2 + $0x20] sm:$0xf]
    %v529 = vld [vmem:[#allocation2 + $0x30] sm:$0xf8]
    %v530 = vld [vmem:[#allocation2 + $0x38] sm:$0xff]
    %v531 = vld [vmem:[#allocation2 + $0x40] sm:$0xff]
    %v532 = vld [vmem:[#allocation2 + $0x48] sm:$0xff]
    %v533 = vld [vmem:[#allocation2 + $0x50] sm:$0xf]
    %v534 = vsel %vm502, 1, 0
    %v535 = vsel %vm503, 1, 0
    %v536 = vsel %vm504, 1, 0
    %v537 = vsel %vm505, 1, 0
    %v538 = vsel %vm506, 1, 0
    %v539 = vsel %vm507, 1, 0
    %v540 = vsel %vm508, 1, 0
    %v541 = vsel %vm509, 1, 0
    %vm542 = vcmp.eq.s32.totalorder %v534, 1
    %vm543 = vcmp.eq.s32.totalorder %v535, 1
    %vm544 = vcmp.eq.s32.totalorder %v536, 1
    %vm545 = vcmp.eq.s32.totalorder %v537, 1
    %vm546 = vcmp.eq.s32.totalorder %v538, 1
    %vm547 = vcmp.eq.s32.totalorder %v539, 1
    %vm548 = vcmp.eq.s32.totalorder %v540, 1
    %vm549 = vcmp.eq.s32.totalorder %v541, 1
    %vm550 = vmpackc.low %vm542, %vm542
    %vm551 = vmpackc.low %vm543, %vm543
    %vm552 = vmpackc.low %vm544, %vm544
    %vm553 = vmpackc.low %vm545, %vm545
    %vm554 = vmpackc.low %vm546, %vm546
    %vm555 = vmpackc.low %vm547, %vm547
    %vm556 = vmpackc.low %vm548, %vm548
    %vm557 = vmpackc.low %vm549, %vm549
    %v558 = vsel %vm550, 65537, 0
    %v559 = vsel %vm551, 65537, 0
    %v560 = vsel %vm552, 65537, 0
    %v561 = vsel %vm553, 65537, 0
    %v562 = vsel %vm554, 65537, 0
    %v563 = vsel %vm555, 65537, 0
    %v564 = vsel %vm556, 65537, 0
    %v565 = vsel %vm557, 65537, 0
    %v566 = vunpack.c.l.b16 %v558
    %v567 = vunpack.c.l.b16 %v559
    %v568 = vunpack.c.l.b16 %v560
    %v569 = vunpack.c.l.b16 %v561
    %v570 = vunpack.c.l.b16 %v562
    %v571 = vunpack.c.l.b16 %v563
    %v572 = vunpack.c.l.b16 %v564
    %v573 = vunpack.c.l.b16 %v565
    %v574 = vpack.c.b16 %v567, %v566
    %v575 = vpack.c.b16 %v569, %v568
    %v576 = vpack.c.b16 %v571, %v570
    %v577 = vpack.c.b16 %v573, %v572
    %vm578 = vsmask.f32 3328
    %v580 = vshrl.u32 %v574, 16
    %v582 = vrot.slane %v580, 4
    %v583 = vshll.u32 %v574, 16
    %v585 = vrot.slane %v583, 5
    %v586 = vor.u32 %v582, %v585
    %v588 = vshrl.u32 %v575, 16
    %v590 = vrot.slane %v588, 4
    %v591 = vshll.u32 %v575, 16
    %v593 = vrot.slane %v591, 5
    %v594 = vor.u32 %v590, %v593
    %v595 = vsel %vm578, %v586, %v594
    %v597 = vshrl.u32 %v576, 16
    %v599 = vrot.slane %v597, 4
    %v600 = vshll.u32 %v576, 16
    %v602 = vrot.slane %v600, 5
    %v603 = vor.u32 %v599, %v602
    %v604 = vsel %vm578, %v594, %v603
    %v606 = vshrl.u32 %v577, 16
    %v608 = vrot.slane %v606, 4
    %v609 = vshll.u32 %v577, 16
    %v611 = vrot.slane %v609, 5
    %v612 = vor.u32 %v608, %v611
    %v613 = vsel %vm578, %v603, %v612
    %vm614 = vcmp.ne.s16.totalorder %v586, 0
    %vm615 = vcmp.ne.s16.totalorder %v595, 0
    %vm616 = vcmp.ne.s16.totalorder %v604, 0
    %vm617 = vcmp.ne.s16.totalorder %v613, 0
    %vm618 = vcmp.ne.s16.totalorder %v612, 0
    %v619 = vsel %vm614, %v524, 0
    %v620 = vsel %vm615, %v525, 0
    %v621 = vsel %vm616, %v526, 0
    %v622 = vsel %vm617, %v527, 0
    %v623 = vsel %vm618, %v528, 0
    %v624 = vsel %vm614, %v529, 0
    %v625 = vsel %vm615, %v530, 0
    %v626 = vsel %vm616, %v531, 0
    %v627 = vsel %vm617, %v532, 0
    %v628 = vsel %vm618, %v533, 0
    %v629 = vld [vmem:[#allocation2] sm:$0xf0]
    %v630 = vld [vmem:[#allocation2 + $0x30] sm:$0xf0]
    %v631 = vld [vmem:[#allocation2 + $0x20] sm:$0x1f]
    %v632 = vld [vmem:[#allocation2 + $0x50] sm:$0x1f]
    %v633 = vsel %vm510, 1, 0
    %v634 = vsel %vm511, 1, 0
    %v635 = vsel %vm512, 1, 0
    %v636 = vsel %vm513, 1, 0
    %v637 = vsel %vm514, 1, 0
    %v638 = vsel %vm515, 1, 0
    %v639 = vsel %vm516, 1, 0
    %v640 = vsel %vm517, 1, 0
    %vm641 = vcmp.eq.s32.totalorder %v633, 1
    %vm642 = vcmp.eq.s32.totalorder %v634, 1
    %vm643 = vcmp.eq.s32.totalorder %v635, 1
    %vm644 = vcmp.eq.s32.totalorder %v636, 1
    %vm645 = vcmp.eq.s32.totalorder %v637, 1
    %vm646 = vcmp.eq.s32.totalorder %v638, 1
    %vm647 = vcmp.eq.s32.totalorder %v639, 1
    %vm648 = vcmp.eq.s32.totalorder %v640, 1
    %vm649 = vmpackc.low %vm641, %vm641
    %vm650 = vmpackc.low %vm642, %vm642
    %vm651 = vmpackc.low %vm643, %vm643
    %vm652 = vmpackc.low %vm644, %vm644
    %vm653 = vmpackc.low %vm645, %vm645
    %vm654 = vmpackc.low %vm646, %vm646
    %vm655 = vmpackc.low %vm647, %vm647
    %vm656 = vmpackc.low %vm648, %vm648
    %v657 = vsel %vm649, 65537, 0
    %v658 = vsel %vm650, 65537, 0
    %v659 = vsel %vm651, 65537, 0
    %v660 = vsel %vm652, 65537, 0
    %v661 = vsel %vm653, 65537, 0
    %v662 = vsel %vm654, 65537, 0
    %v663 = vsel %vm655, 65537, 0
    %v664 = vsel %vm656, 65537, 0
    %v665 = vunpack.c.l.b16 %v657
    %v666 = vunpack.c.l.b16 %v658
    %v667 = vunpack.c.l.b16 %v659
    %v668 = vunpack.c.l.b16 %v660
    %v669 = vunpack.c.l.b16 %v661
    %v670 = vunpack.c.l.b16 %v662
    %v671 = vunpack.c.l.b16 %v663
    %v672 = vunpack.c.l.b16 %v664
    %v673 = vpack.c.b16 %v666, %v665
    %v674 = vpack.c.b16 %v668, %v667
    %v675 = vpack.c.b16 %v670, %v669
    %v676 = vpack.c.b16 %v672, %v671
    %vm677 = vsmask.f32 4352
    %v679 = vshrl.u32 %v673, 16
    %v681 = vrot.slane %v679, 3
    %v682 = vshll.u32 %v673, 16
    %v684 = vrot.slane %v682, 4
    %v685 = vor.u32 %v681, %v684
    %v687 = vshrl.u32 %v674, 16
    %v689 = vrot.slane %v687, 3
    %v690 = vshll.u32 %v674, 16
    %v692 = vrot.slane %v690, 4
    %v693 = vor.u32 %v689, %v692
    %v694 = vsel %vm677, %v685, %v693
    %v696 = vshrl.u32 %v675, 16
    %v698 = vrot.slane %v696, 3
    %v699 = vshll.u32 %v675, 16
    %v701 = vrot.slane %v699, 4
    %v702 = vor.u32 %v698, %v701
    %v703 = vsel %vm677, %v693, %v702
    %v705 = vshrl.u32 %v676, 16
    %v707 = vrot.slane %v705, 3
    %v708 = vshll.u32 %v676, 16
    %v710 = vrot.slane %v708, 4
    %v711 = vor.u32 %v707, %v710
    %v712 = vsel %vm677, %v702, %v711
    %vm713 = vcmp.ne.s16.totalorder %v685, 0
    %vm714 = vcmp.ne.s16.totalorder %v694, 0
    %vm715 = vcmp.ne.s16.totalorder %v703, 0
    %vm716 = vcmp.ne.s16.totalorder %v712, 0
    %vm717 = vcmp.ne.s16.totalorder %v711, 0
    %v718 = vsel %vm713, %v629, 0
    %v719 = vsel %vm714, %v525, 0
    %v720 = vsel %vm715, %v526, 0
    %v721 = vsel %vm716, %v527, 0
    %v722 = vsel %vm717, %v631, 0
    %v723 = vsel %vm713, %v630, 0
    %v724 = vsel %vm714, %v530, 0
    %v725 = vsel %vm715, %v531, 0
    %v726 = vsel %vm716, %v532, 0
    %v727 = vsel %vm717, %v632, 0
    %v728 = vld [vmem:[#allocation2] sm:$0x80]
    %v729 = vld [vmem:[#allocation2 + $0x20] sm:$0xff]
    %v730 = vld [vmem:[#allocation2 + $0x30] sm:$0x80]
    %v731 = vld [vmem:[#allocation2 + $0x50] sm:$0xff]
    %vm732 = vsmask.f32 7424
    %v733 = vrot.slane %v583, 1
    %v734 = vor.u32 %v580, %v733
    %v735 = vrot.slane %v591, 1
    %v736 = vsel %vm732, %v734, %v735
    %v737 = vor.u32 %v588, %v735
    %v738 = vrot.slane %v600, 1
    %v739 = vsel %vm732, %v737, %v738
    %v740 = vor.u32 %v597, %v738
    %v741 = vrot.slane %v609, 1
    %v742 = vsel %vm732, %v740, %v741
    %v743 = vor.u32 %v606, %v741
    %vm744 = vcmp.ne.s16.totalorder %v733, 0
    %vm745 = vcmp.ne.s16.totalorder %v736, 0
    %vm746 = vcmp.ne.s16.totalorder %v739, 0
    %vm747 = vcmp.ne.s16.totalorder %v742, 0
    %vm748 = vcmp.ne.s16.totalorder %v743, 0
    %v749 = vsel %vm744, %v728, 0
    %v750 = vsel %vm745, %v525, 0
    %v751 = vsel %vm746, %v526, 0
    %v752 = vsel %vm747, %v527, 0
    %v753 = vsel %vm748, %v729, 0
    %v754 = vsel %vm744, %v730, 0
    %v755 = vsel %vm745, %v530, 0
    %v756 = vsel %vm746, %v531, 0
    %v757 = vsel %vm747, %v532, 0
    %v758 = vsel %vm748, %v731, 0
    %v759 = vld [vmem:[#allocation2 + $0x28] sm:$0x1]
    %v760 = vld [vmem:[#allocation2 + $0x58] sm:$0x1]
    %vm761 = vsmask.f32 256
    %v762 = vrot.slane %v679, 7
    %v763 = vor.u32 %v762, %v682
    %v764 = vrot.slane %v687, 7
    %v765 = vor.u32 %v764, %v690
    %v766 = vsel %vm761, %v762, %v765
    %v767 = vrot.slane %v696, 7
    %v768 = vor.u32 %v767, %v699
    %v769 = vsel %vm761, %v764, %v768
    %v770 = vrot.slane %v705, 7
    %v771 = vor.u32 %v770, %v708
    %v772 = vsel %vm761, %v767, %v771
    %vm773 = vcmp.ne.s16.totalorder %v763, 0
    %vm774 = vcmp.ne.s16.totalorder %v766, 0
    %vm775 = vcmp.ne.s16.totalorder %v769, 0
    %vm776 = vcmp.ne.s16.totalorder %v772, 0
    %vm777 = vcmp.ne.s16.totalorder %v770, 0
    %v778 = vsel %vm773, %v525, 0
    %v779 = vsel %vm774, %v526, 0
    %v780 = vsel %vm775, %v527, 0
    %v781 = vsel %vm776, %v729, 0
    %v782 = vsel %vm777, %v759, 0
    %v783 = vsel %vm773, %v530, 0
    %v784 = vsel %vm774, %v531, 0
    %v785 = vsel %vm775, %v532, 0
    %v786 = vsel %vm776, %v731, 0
    %v787 = vsel %vm777, %v760, 0
    %v788 = vld [vmem:[#allocation2 + $0x8] sm:$0xf8]
    %v789 = vld [vmem:[#allocation2 + $0x28] sm:$0xf]
    %v790 = vld [vmem:[#allocation2 + $0x38] sm:$0xf8]
    %v791 = vld [vmem:[#allocation2 + $0x58] sm:$0xf]
    %v792 = vsel %vm614, %v788, 0
    %v793 = vsel %vm615, %v526, 0
    %v794 = vsel %vm616, %v527, 0
    %v795 = vsel %vm617, %v729, 0
    %v796 = vsel %vm618, %v789, 0
    %v797 = vsel %vm614, %v790, 0
    %v798 = vsel %vm615, %v531, 0
    %v799 = vsel %vm616, %v532, 0
    %v800 = vsel %vm617, %v731, 0
    %v801 = vsel %vm618, %v791, 0
    %v802 = vld [vmem:[#allocation2 + $0x8] sm:$0xf0]
    %v803 = vld [vmem:[#allocation2 + $0x38] sm:$0xf0]
    %v804 = vld [vmem:[#allocation2 + $0x28] sm:$0x1f]
    %v805 = vld [vmem:[#allocation2 + $0x58] sm:$0x1f]
    %v806 = vsel %vm713, %v802, 0
    %v807 = vsel %vm714, %v526, 0
    %v808 = vsel %vm715, %v527, 0
    %v809 = vsel %vm716, %v729, 0
    %v810 = vsel %vm717, %v804, 0
    %v811 = vsel %vm713, %v803, 0
    %v812 = vsel %vm714, %v531, 0
    %v813 = vsel %vm715, %v532, 0
    %v814 = vsel %vm716, %v731, 0
    %v815 = vsel %vm717, %v805, 0
    %v817 = vshrl.u32 %v629, 16
    %v819 = vshll.u32 %v629, 16
    %v821 = vrot.slane %v819, 1
    %v822 = vor.u32 %v817, %v821
    %v824 = vshll.u32 %v525, 16
    %v826 = vrot.slane %v824, 1
    %v827 = vsel %vm732, %v822, %v826
    %v828 = vshrl.u32 %v525, 16
    %v830 = vor.u32 %v828, %v826
    %v832 = vshll.u32 %v526, 16
    %v834 = vrot.slane %v832, 1
    %v835 = vsel %vm732, %v830, %v834
    %v836 = vshrl.u32 %v526, 16
    %v838 = vor.u32 %v836, %v834
    %v840 = vshll.u32 %v527, 16
    %v842 = vrot.slane %v840, 1
    %v843 = vsel %vm732, %v838, %v842
    %v844 = vshrl.u32 %v527, 16
    %v846 = vor.u32 %v844, %v842
    %v848 = vshll.u32 %v528, 16
    %v850 = vrot.slane %v848, 1
    %v851 = vsel %vm732, %v846, %v850
    %v852 = vshrl.u32 %v528, 16
    %v854 = vor.u32 %v852, %v850
    %v856 = vshrl.u32 %v630, 16
    %v858 = vshll.u32 %v630, 16
    %v860 = vrot.slane %v858, 1
    %v861 = vor.u32 %v856, %v860
    %v863 = vshll.u32 %v530, 16
    %v865 = vrot.slane %v863, 1
    %v866 = vsel %vm732, %v861, %v865
    %v867 = vshrl.u32 %v530, 16
    %v869 = vor.u32 %v867, %v865
    %v871 = vshll.u32 %v531, 16
    %v873 = vrot.slane %v871, 1
    %v874 = vsel %vm732, %v869, %v873
    %v875 = vshrl.u32 %v531, 16
    %v877 = vor.u32 %v875, %v873
    %v879 = vshll.u32 %v532, 16
    %v881 = vrot.slane %v879, 1
    %v882 = vsel %vm732, %v877, %v881
    %v883 = vshrl.u32 %v532, 16
    %v885 = vor.u32 %v883, %v881
    %v887 = vshll.u32 %v533, 16
    %v889 = vrot.slane %v887, 1
    %v890 = vsel %vm732, %v885, %v889
    %v891 = vshrl.u32 %v533, 16
    %v893 = vor.u32 %v891, %v889
    %894 = vrot.lane.b32.xlu0 %v827, 4
    %v895 = vpop.permute.xlu0 %894
    %896 = vrot.lane.b32.xlu0 %v835, 4
    %v897 = vpop.permute.xlu0 %896
    %898 = vrot.lane.b32.xlu0 %v843, 4
    %v899 = vpop.permute.xlu0 %898
    %900 = vrot.lane.b32.xlu0 %v851, 4
    %v901 = vpop.permute.xlu0 %900
    %902 = vrot.lane.b32.xlu0 %v854, 4
    %v903 = vpop.permute.xlu0 %902
    %904 = vrot.lane.b32.xlu0 %v866, 4
    %v905 = vpop.permute.xlu0 %904
    %906 = vrot.lane.b32.xlu0 %v874, 4
    %v907 = vpop.permute.xlu0 %906
    %908 = vrot.lane.b32.xlu0 %v882, 4
    %v909 = vpop.permute.xlu0 %908
    %910 = vrot.lane.b32.xlu0 %v890, 4
    %v911 = vpop.permute.xlu0 %910
    %912 = vrot.lane.b32.xlu0 %v893, 4
    %v913 = vpop.permute.xlu0 %912
    %vm924 = vcmask 1046528
    %v925 = vrot.slane %v718, 1
    %v926 = vrot.slane %v719, 1
    %v927 = vsel %vm924, %v925, %v926
    %v928 = vrot.slane %v720, 1
    %v929 = vsel %vm924, %v926, %v928
    %v930 = vrot.slane %v721, 1
    %v931 = vsel %vm924, %v928, %v930
    %v932 = vrot.slane %v722, 1
    %v933 = vsel %vm924, %v930, %v932
    %v934 = vrot.slane %v723, 1
    %v935 = vrot.slane %v724, 1
    %v936 = vsel %vm924, %v934, %v935
    %v937 = vrot.slane %v725, 1
    %v938 = vsel %vm924, %v935, %v937
    %v939 = vrot.slane %v726, 1
    %v940 = vsel %vm924, %v937, %v939
    %v941 = vrot.slane %v727, 1
    %v942 = vsel %vm924, %v939, %v941
    %943 = vrot.lane.b32.xlu0 %v927, 8
    %v944 = vpop.permute.xlu0 %943
    %945 = vrot.lane.b32.xlu0 %v929, 8
    %v946 = vpop.permute.xlu0 %945
    %947 = vrot.lane.b32.xlu0 %v931, 8
    %v948 = vpop.permute.xlu0 %947
    %949 = vrot.lane.b32.xlu0 %v933, 8
    %v950 = vpop.permute.xlu0 %949
    %951 = vrot.lane.b32.xlu0 %v932, 8
    %v952 = vpop.permute.xlu0 %951
    %953 = vrot.lane.b32.xlu0 %v936, 8
    %v954 = vpop.permute.xlu0 %953
    %955 = vrot.lane.b32.xlu0 %v938, 8
    %v956 = vpop.permute.xlu0 %955
    %957 = vrot.lane.b32.xlu0 %v940, 8
    %v958 = vpop.permute.xlu0 %957
    %959 = vrot.lane.b32.xlu0 %v942, 8
    %v960 = vpop.permute.xlu0 %959
    %961 = vrot.lane.b32.xlu0 %v941, 8
    %v962 = vpop.permute.xlu0 %961
    %vm973 = vcmask 1043456
    %v974 = vrot.slane %v749, 4
    %v975 = vrot.slane %v750, 4
    %v976 = vsel %vm973, %v974, %v975
    %v977 = vrot.slane %v751, 4
    %v978 = vsel %vm973, %v975, %v977
    %v979 = vrot.slane %v752, 4
    %v980 = vsel %vm973, %v977, %v979
    %v981 = vrot.slane %v753, 4
    %v982 = vsel %vm973, %v979, %v981
    %v983 = vrot.slane %v754, 4
    %v984 = vrot.slane %v755, 4
    %v985 = vsel %vm973, %v983, %v984
    %v986 = vrot.slane %v756, 4
    %v987 = vsel %vm973, %v984, %v986
    %v988 = vrot.slane %v757, 4
    %v989 = vsel %vm973, %v986, %v988
    %v990 = vrot.slane %v758, 4
    %v991 = vsel %vm973, %v988, %v990
    %992 = vrot.lane.b32.xlu0 %v976, 12
    %v993 = vpop.permute.xlu0 %992
    %994 = vrot.lane.b32.xlu0 %v978, 12
    %v995 = vpop.permute.xlu0 %994
    %996 = vrot.lane.b32.xlu0 %v980, 12
    %v997 = vpop.permute.xlu0 %996
    %998 = vrot.lane.b32.xlu0 %v982, 12
    %v999 = vpop.permute.xlu0 %998
    %1000 = vrot.lane.b32.xlu0 %v981, 12
    %v1001 = vpop.permute.xlu0 %1000
    %1002 = vrot.lane.b32.xlu0 %v985, 12
    %v1003 = vpop.permute.xlu0 %1002
    %1004 = vrot.lane.b32.xlu0 %v987, 12
    %v1005 = vpop.permute.xlu0 %1004
    %1006 = vrot.lane.b32.xlu0 %v989, 12
    %v1007 = vpop.permute.xlu0 %1006
    %1008 = vrot.lane.b32.xlu0 %v991, 12
    %v1009 = vpop.permute.xlu0 %1008
    %1010 = vrot.lane.b32.xlu0 %v990, 12
    %v1011 = vpop.permute.xlu0 %1010
    %v1012 = vrot.slane %v828, 4
    %v1013 = vrot.slane %v824, 5
    %v1014 = vor.u32 %v1012, %v1013
    %v1015 = vrot.slane %v836, 4
    %v1016 = vrot.slane %v832, 5
    %v1017 = vor.u32 %v1015, %v1016
    %v1018 = vsel %vm578, %v1014, %v1017
    %v1019 = vrot.slane %v844, 4
    %v1020 = vrot.slane %v840, 5
    %v1021 = vor.u32 %v1019, %v1020
    %v1022 = vsel %vm578, %v1017, %v1021
    %v1024 = vshrl.u32 %v729, 16
    %v1026 = vrot.slane %v1024, 4
    %v1027 = vshll.u32 %v729, 16
    %v1029 = vrot.slane %v1027, 5
    %v1030 = vor.u32 %v1026, %v1029
    %v1031 = vsel %vm578, %v1021, %v1030
    %v1032 = vrot.slane %v867, 4
    %v1033 = vrot.slane %v863, 5
    %v1034 = vor.u32 %v1032, %v1033
    %v1035 = vrot.slane %v875, 4
    %v1036 = vrot.slane %v871, 5
    %v1037 = vor.u32 %v1035, %v1036
    %v1038 = vsel %vm578, %v1034, %v1037
    %v1039 = vrot.slane %v883, 4
    %v1040 = vrot.slane %v879, 5
    %v1041 = vor.u32 %v1039, %v1040
    %v1042 = vsel %vm578, %v1037, %v1041
    %v1044 = vshrl.u32 %v731, 16
    %v1046 = vrot.slane %v1044, 4
    %v1047 = vshll.u32 %v731, 16
    %v1049 = vrot.slane %v1047, 5
    %v1050 = vor.u32 %v1046, %v1049
    %v1051 = vsel %vm578, %v1041, %v1050
    %1052 = vrot.lane.b32.xlu0 %v1014, 16
    %v1053 = vpop.permute.xlu0 %1052
    %1054 = vrot.lane.b32.xlu0 %v1018, 16
    %v1055 = vpop.permute.xlu0 %1054
    %1056 = vrot.lane.b32.xlu0 %v1022, 16
    %v1057 = vpop.permute.xlu0 %1056
    %1058 = vrot.lane.b32.xlu0 %v1031, 16
    %v1059 = vpop.permute.xlu0 %1058
    %1060 = vrot.lane.b32.xlu0 %v1030, 16
    %v1061 = vpop.permute.xlu0 %1060
    %1062 = vrot.lane.b32.xlu0 %v1034, 16
    %v1063 = vpop.permute.xlu0 %1062
    %1064 = vrot.lane.b32.xlu0 %v1038, 16
    %v1065 = vpop.permute.xlu0 %1064
    %1066 = vrot.lane.b32.xlu0 %v1042, 16
    %v1067 = vpop.permute.xlu0 %1066
    %1068 = vrot.lane.b32.xlu0 %v1051, 16
    %v1069 = vpop.permute.xlu0 %1068
    %1070 = vrot.lane.b32.xlu0 %v1050, 16
    %v1071 = vpop.permute.xlu0 %1070
    %vm1082 = vcmask 1042432
    %v1083 = vrot.slane %v778, 5
    %v1084 = vrot.slane %v779, 5
    %v1085 = vsel %vm1082, %v1083, %v1084
    %v1086 = vrot.slane %v780, 5
    %v1087 = vsel %vm1082, %v1084, %v1086
    %v1088 = vrot.slane %v781, 5
    %v1089 = vsel %vm1082, %v1086, %v1088
    %v1090 = vrot.slane %v782, 5
    %v1091 = vsel %vm1082, %v1088, %v1090
    %v1092 = vrot.slane %v783, 5
    %v1093 = vrot.slane %v784, 5
    %v1094 = vsel %vm1082, %v1092, %v1093
    %v1095 = vrot.slane %v785, 5
    %v1096 = vsel %vm1082, %v1093, %v1095
    %v1097 = vrot.slane %v786, 5
    %v1098 = vsel %vm1082, %v1095, %v1097
    %v1099 = vrot.slane %v787, 5
    %v1100 = vsel %vm1082, %v1097, %v1099
    %1101 = vrot.lane.b32.xlu0 %v1083, 20
    %v1102 = vpop.permute.xlu0 %1101
    %1103 = vrot.lane.b32.xlu0 %v1085, 20
    %v1104 = vpop.permute.xlu0 %1103
    %1105 = vrot.lane.b32.xlu0 %v1087, 20
    %v1106 = vpop.permute.xlu0 %1105
    %1107 = vrot.lane.b32.xlu0 %v1089, 20
    %v1108 = vpop.permute.xlu0 %1107
    %1109 = vrot.lane.b32.xlu0 %v1091, 20
    %v1110 = vpop.permute.xlu0 %1109
    %1111 = vrot.lane.b32.xlu0 %v1092, 20
    %v1112 = vpop.permute.xlu0 %1111
    %1113 = vrot.lane.b32.xlu0 %v1094, 20
    %v1114 = vpop.permute.xlu0 %1113
    %1115 = vrot.lane.b32.xlu0 %v1096, 20
    %v1116 = vpop.permute.xlu0 %1115
    %1117 = vrot.lane.b32.xlu0 %v1098, 20
    %v1118 = vpop.permute.xlu0 %1117
    %1119 = vrot.lane.b32.xlu0 %v1100, 20
    %v1120 = vpop.permute.xlu0 %1119
    %1131 = vrot.lane.b32.xlu0 %v792, 24
    %v1132 = vpop.permute.xlu0 %1131
    %1133 = vrot.lane.b32.xlu0 %v793, 24
    %v1134 = vpop.permute.xlu0 %1133
    %1135 = vrot.lane.b32.xlu0 %v794, 24
    %v1136 = vpop.permute.xlu0 %1135
    %1137 = vrot.lane.b32.xlu0 %v795, 24
    %v1138 = vpop.permute.xlu0 %1137
    %1139 = vrot.lane.b32.xlu0 %v796, 24
    %v1140 = vpop.permute.xlu0 %1139
    %1141 = vrot.lane.b32.xlu0 %v797, 24
    %v1142 = vpop.permute.xlu0 %1141
    %1143 = vrot.lane.b32.xlu0 %v798, 24
    %v1144 = vpop.permute.xlu0 %1143
    %1145 = vrot.lane.b32.xlu0 %v799, 24
    %v1146 = vpop.permute.xlu0 %1145
    %1147 = vrot.lane.b32.xlu0 %v800, 24
    %v1148 = vpop.permute.xlu0 %1147
    %1149 = vrot.lane.b32.xlu0 %v801, 24
    %v1150 = vpop.permute.xlu0 %1149
    %v1152 = vshrl.u32 %v802, 16
    %v1154 = vshll.u32 %v802, 16
    %v1156 = vrot.slane %v1154, 1
    %v1157 = vor.u32 %v1152, %v1156
    %v1158 = vsel %vm732, %v1157, %v834
    %v1159 = vrot.slane %v1027, 1
    %v1160 = vsel %vm732, %v846, %v1159
    %v1161 = vor.u32 %v1024, %v1159
    %v1163 = vshll.u32 %v789, 16
    %v1165 = vrot.slane %v1163, 1
    %v1166 = vsel %vm732, %v1161, %v1165
    %v1167 = vshrl.u32 %v789, 16
    %v1169 = vor.u32 %v1167, %v1165
    %v1171 = vshrl.u32 %v803, 16
    %v1173 = vshll.u32 %v803, 16
    %v1175 = vrot.slane %v1173, 1
    %v1176 = vor.u32 %v1171, %v1175
    %v1177 = vsel %vm732, %v1176, %v873
    %v1178 = vrot.slane %v1047, 1
    %v1179 = vsel %vm732, %v885, %v1178
    %v1180 = vor.u32 %v1044, %v1178
    %v1182 = vshll.u32 %v791, 16
    %v1184 = vrot.slane %v1182, 1
    %v1185 = vsel %vm732, %v1180, %v1184
    %v1186 = vshrl.u32 %v791, 16
    %v1188 = vor.u32 %v1186, %v1184
    %1189 = vrot.lane.b32.xlu0 %v1158, 28
    %v1190 = vpop.permute.xlu0 %1189
    %1191 = vrot.lane.b32.xlu0 %v843, 28
    %v1192 = vpop.permute.xlu0 %1191
    %1193 = vrot.lane.b32.xlu0 %v1160, 28
    %v1194 = vpop.permute.xlu0 %1193
    %1195 = vrot.lane.b32.xlu0 %v1166, 28
    %v1196 = vpop.permute.xlu0 %1195
    %1197 = vrot.lane.b32.xlu0 %v1169, 28
    %v1198 = vpop.permute.xlu0 %1197
    %1199 = vrot.lane.b32.xlu0 %v1177, 28
    %v1200 = vpop.permute.xlu0 %1199
    %1201 = vrot.lane.b32.xlu0 %v882, 28
    %v1202 = vpop.permute.xlu0 %1201
    %1203 = vrot.lane.b32.xlu0 %v1179, 28
    %v1204 = vpop.permute.xlu0 %1203
    %1205 = vrot.lane.b32.xlu0 %v1185, 28
    %v1206 = vpop.permute.xlu0 %1205
    %1207 = vrot.lane.b32.xlu0 %v1188, 28
    %v1208 = vpop.permute.xlu0 %1207
    %v1219 = vrot.slane %v806, 1
    %v1220 = vrot.slane %v807, 1
    %v1221 = vsel %vm924, %v1219, %v1220
    %v1222 = vrot.slane %v808, 1
    %v1223 = vsel %vm924, %v1220, %v1222
    %v1224 = vrot.slane %v809, 1
    %v1225 = vsel %vm924, %v1222, %v1224
    %v1226 = vrot.slane %v810, 1
    %v1227 = vsel %vm924, %v1224, %v1226
    %v1228 = vrot.slane %v811, 1
    %v1229 = vrot.slane %v812, 1
    %v1230 = vsel %vm924, %v1228, %v1229
    %v1231 = vrot.slane %v813, 1
    %v1232 = vsel %vm924, %v1229, %v1231
    %v1233 = vrot.slane %v814, 1
    %v1234 = vsel %vm924, %v1231, %v1233
    %v1235 = vrot.slane %v815, 1
    %v1236 = vsel %vm924, %v1233, %v1235
    %1237 = vrot.lane.b32.xlu0 %v1221, 32
    %v1238 = vpop.permute.xlu0 %1237
    %1239 = vrot.lane.b32.xlu0 %v1223, 32
    %v1240 = vpop.permute.xlu0 %1239
    %1241 = vrot.lane.b32.xlu0 %v1225, 32
    %v1242 = vpop.permute.xlu0 %1241
    %1243 = vrot.lane.b32.xlu0 %v1227, 32
    %v1244 = vpop.permute.xlu0 %1243
    %1245 = vrot.lane.b32.xlu0 %v1226, 32
    %v1246 = vpop.permute.xlu0 %1245
    %1247 = vrot.lane.b32.xlu0 %v1230, 32
    %v1248 = vpop.permute.xlu0 %1247
    %1249 = vrot.lane.b32.xlu0 %v1232, 32
    %v1250 = vpop.permute.xlu0 %1249
    %1251 = vrot.lane.b32.xlu0 %v1234, 32
    %v1252 = vpop.permute.xlu0 %1251
    %1253 = vrot.lane.b32.xlu0 %v1236, 32
    %v1254 = vpop.permute.xlu0 %1253
    %1255 = vrot.lane.b32.xlu0 %v1235, 32
    %v1256 = vpop.permute.xlu0 %1255
    %v1259 = vsel %vm25, %v619, %v895
    %v1262 = vsel %vm25, %v620, %v897
    %v1265 = vsel %vm25, %v621, %v899
    %v1268 = vsel %vm25, %v622, %v901
    %v1271 = vsel %vm25, %v623, %v903
    %v1274 = vsel %vm25, %v624, %v905
    %v1277 = vsel %vm25, %v625, %v907
    %v1280 = vsel %vm25, %v626, %v909
    %v1283 = vsel %vm25, %v627, %v911
    %v1286 = vsel %vm25, %v628, %v913
    %v1288 = vsel %vm30, %v1259, %v944
    %v1290 = vsel %vm30, %v1262, %v946
    %v1292 = vsel %vm30, %v1265, %v948
    %v1294 = vsel %vm30, %v1268, %v950
    %v1296 = vsel %vm30, %v1271, %v952
    %v1298 = vsel %vm30, %v1274, %v954
    %v1300 = vsel %vm30, %v1277, %v956
    %v1302 = vsel %vm30, %v1280, %v958
    %v1304 = vsel %vm30, %v1283, %v960
    %v1306 = vsel %vm30, %v1286, %v962
    %vm1307 = vcmask 97280
    %v1309 = vsel %vm1307, %v1288, %v993
    %v1311 = vsel %vm1307, %v1290, %v995
    %v1313 = vsel %vm1307, %v1292, %v997
    %v1315 = vsel %vm1307, %v1294, %v999
    %v1317 = vsel %vm1307, %v1296, %v1001
    %v1319 = vsel %vm1307, %v1298, %v1003
    %v1321 = vsel %vm1307, %v1300, %v1005
    %v1323 = vsel %vm1307, %v1302, %v1007
    %v1325 = vsel %vm1307, %v1304, %v1009
    %v1327 = vsel %vm1307, %v1306, %v1011
    %vm1328 = vcmask 130048
    %v1330 = vsel %vm1328, %v1309, %v1053
    %v1332 = vsel %vm1328, %v1311, %v1055
    %v1334 = vsel %vm1328, %v1313, %v1057
    %v1336 = vsel %vm1328, %v1315, %v1059
    %v1338 = vsel %vm1328, %v1317, %v1061
    %v1340 = vsel %vm1328, %v1319, %v1063
    %v1342 = vsel %vm1328, %v1321, %v1065
    %v1344 = vsel %vm1328, %v1323, %v1067
    %v1346 = vsel %vm1328, %v1325, %v1069
    %v1348 = vsel %vm1328, %v1327, %v1071
    %vm1349 = vcmask 162816
    %v1351 = vsel %vm1349, %v1330, %v1102
    %v1353 = vsel %vm1349, %v1332, %v1104
    %v1355 = vsel %vm1349, %v1334, %v1106
    %v1357 = vsel %vm1349, %v1336, %v1108
    %v1359 = vsel %vm1349, %v1338, %v1110
    %v1361 = vsel %vm1349, %v1340, %v1112
    %v1363 = vsel %vm1349, %v1342, %v1114
    %v1365 = vsel %vm1349, %v1344, %v1116
    %v1367 = vsel %vm1349, %v1346, %v1118
    %v1369 = vsel %vm1349, %v1348, %v1120
    %vm1370 = vcmask 195584
    %v1372 = vsel %vm1370, %v1351, %v1132
    %v1374 = vsel %vm1370, %v1353, %v1134
    %v1376 = vsel %vm1370, %v1355, %v1136
    %v1378 = vsel %vm1370, %v1357, %v1138
    %v1380 = vsel %vm1370, %v1359, %v1140
    %v1382 = vsel %vm1370, %v1361, %v1142
    %v1384 = vsel %vm1370, %v1363, %v1144
    %v1386 = vsel %vm1370, %v1365, %v1146
    %v1388 = vsel %vm1370, %v1367, %v1148
    %v1390 = vsel %vm1370, %v1369, %v1150
    %vm1391 = vcmask 228352
    %v1393 = vsel %vm1391, %v1372, %v1190
    %v1395 = vsel %vm1391, %v1374, %v1192
    %v1397 = vsel %vm1391, %v1376, %v1194
    %v1399 = vsel %vm1391, %v1378, %v1196
    %v1401 = vsel %vm1391, %v1380, %v1198
    %v1403 = vsel %vm1391, %v1382, %v1200
    %v1405 = vsel %vm1391, %v1384, %v1202
    %v1407 = vsel %vm1391, %v1386, %v1204
    %v1409 = vsel %vm1391, %v1388, %v1206
    %v1411 = vsel %vm1391, %v1390, %v1208
    %vm1412 = vcmask 261120
    %v1414 = vsel %vm1412, %v1393, %v1238
    %v1416 = vsel %vm1412, %v1395, %v1240
    %v1418 = vsel %vm1412, %v1397, %v1242
    %v1420 = vsel %vm1412, %v1399, %v1244
    %v1422 = vsel %vm1412, %v1401, %v1246
    %v1424 = vsel %vm1412, %v1403, %v1248
    %v1426 = vsel %vm1412, %v1405, %v1250
    %v1428 = vsel %vm1412, %v1407, %v1252
    %v1430 = vsel %vm1412, %v1409, %v1254
    %v1432 = vsel %vm1412, %v1411, %v1256
    %v1433 = vshrl.u32 %v1414, 16
    %v1435 = vrot.slane %v1433, 3
    %v1436 = vshll.u32 %v1414, 16
    %v1438 = vrot.slane %v1436, 4
    %v1439 = vor.u32 %v1435, %v1438
    %v1440 = vshrl.u32 %v1416, 16
    %v1442 = vrot.slane %v1440, 3
    %v1443 = vshll.u32 %v1416, 16
    %v1445 = vrot.slane %v1443, 4
    %v1446 = vor.u32 %v1442, %v1445
    %v1447 = vsel %vm677, %v1439, %v1446
    %v1448 = vshrl.u32 %v1418, 16
    %v1450 = vrot.slane %v1448, 3
    %v1451 = vshll.u32 %v1418, 16
    %v1453 = vrot.slane %v1451, 4
    %v1454 = vor.u32 %v1450, %v1453
    %v1455 = vsel %vm677, %v1446, %v1454
    %v1456 = vshrl.u32 %v1420, 16
    %v1458 = vrot.slane %v1456, 3
    %v1459 = vshll.u32 %v1420, 16
    %v1461 = vrot.slane %v1459, 4
    %v1462 = vor.u32 %v1458, %v1461
    %v1463 = vsel %vm677, %v1454, %v1462
    %v1464 = vshrl.u32 %v1422, 16
    %v1466 = vrot.slane %v1464, 3
    %v1467 = vshll.u32 %v1422, 16
    %v1469 = vrot.slane %v1467, 4
    %v1470 = vor.u32 %v1466, %v1469
    %v1471 = vsel %vm677, %v1462, %v1470
    %v1472 = vshrl.u32 %v1424, 16
    %v1474 = vrot.slane %v1472, 3
    %v1475 = vshll.u32 %v1424, 16
    %v1477 = vrot.slane %v1475, 4
    %v1478 = vor.u32 %v1474, %v1477
    %v1479 = vshrl.u32 %v1426, 16
    %v1481 = vrot.slane %v1479, 3
    %v1482 = vshll.u32 %v1426, 16
    %v1484 = vrot.slane %v1482, 4
    %v1485 = vor.u32 %v1481, %v1484
    %v1486 = vsel %vm677, %v1478, %v1485
    %v1487 = vshrl.u32 %v1428, 16
    %v1489 = vrot.slane %v1487, 3
    %v1490 = vshll.u32 %v1428, 16
    %v1492 = vrot.slane %v1490, 4
    %v1493 = vor.u32 %v1489, %v1492
    %v1494 = vsel %vm677, %v1485, %v1493
    %v1495 = vshrl.u32 %v1430, 16
    %v1497 = vrot.slane %v1495, 3
    %v1498 = vshll.u32 %v1430, 16
    %v1500 = vrot.slane %v1498, 4
    %v1501 = vor.u32 %v1497, %v1500
    %v1502 = vsel %vm677, %v1493, %v1501
    %v1503 = vshrl.u32 %v1432, 16
    %v1505 = vrot.slane %v1503, 3
    %v1506 = vshll.u32 %v1432, 16
    %v1508 = vrot.slane %v1506, 4
    %v1509 = vor.u32 %v1505, %v1508
    %v1510 = vsel %vm677, %v1501, %v1509
    %v1512 = vlaneseq
    %v1513 = vshrl.u32 %v1512, 7
    %v1514 = vsub.s32 0, %v1513
    %v1515 = vrot.slane %v523, %v1514
    %v1522 = vunpack.c.l.b16 %v518
    %v1523 = vunpack.c.l.b16 %v519
    %v1524 = vunpack.c.l.b16 %v520
    %v1525 = vunpack.c.l.b16 %v521
    %v1526 = vunpack.c.l.b16 %v522
    %v1527 = vpack.c.b16 %v1523, %v1522
    %v1528 = vpack.c.b16 %v1525, %v1524
    %v1529 = vpack.c.b16 %v1526, %v1526
    %vm1532 = vcmask 293888
    %v1534 = vsel %vm1532, %v1447, 0
    %v1537 = vsel %vm1532, %v1455, 0
    %v1540 = vsel %vm1532, %v1463, 0
    %v1543 = vsel %vm1532, %v1471, 0
    %v1546 = vsel %vm1532, %v1486, 0
    %v1549 = vsel %vm1532, %v1494, 0
    %v1552 = vsel %vm1532, %v1502, 0
    %v1555 = vsel %vm1532, %v1510, 0
    %vm1557 = vcmask 1041408
    %v1559 = vsel %vm1557, %v1529, 0
    %1561 = vmatprep.subr.bf16.mxu0 0
    %1562 = vmatpush1.bf16.msra.mxu0 %v1527
    %1563 = vmatprep.subr.bf16.mxu0 0
    %1564 = vmatpush1.bf16.msra.mxu0 %v1528
    %1565 = vmatprep.subr.bf16.mxu0 0
    %1566 = vmatpush1.bf16.msra.mxu0 %v1559
    %1567 = vmatprep.subr.bf16.mxu0 0
    %1568 = vmatpush1.bf16.msra.mxu0 0
    %1569 = vmatprep.subr.bf16.mxu0 0
    %1570 = vmatpush1.bf16.msra.mxu0 0
    %1571 = vmatprep.subr.bf16.mxu0 0
    %1572 = vmatpush1.bf16.msra.mxu0 0
    %1573 = vmatprep.subr.bf16.mxu0 0
    %1574 = vmatpush1.bf16.msra.mxu0 0
    %1575 = vmatprep.subr.bf16.mxu0 0
    %1576 = vmatpush1.bf16.msra.mxu0 0
    %1577 = vmatprep.subr.bf16.mxu0 0
    %1578 = vmatpush1.bf16.msra.mxu0 0
    %1579 = vmatprep.subr.bf16.mxu0 0
    %1580 = vmatpush1.bf16.msra.mxu0 0
    %1581 = vmatprep.subr.bf16.mxu0 0
    %1582 = vmatpush1.bf16.msra.mxu0 0
    %1583 = vmatprep.subr.bf16.mxu0 0
    %1584 = vmatpush1.bf16.msra.mxu0 0
    %1585 = vmatprep.subr.bf16.mxu0 0
    %1586 = vmatpush1.bf16.msra.mxu0 0
    %1587 = vmatprep.subr.bf16.mxu0 0
    %1588 = vmatpush1.bf16.msra.mxu0 0
    %1589 = vmatprep.subr.bf16.mxu0 0
    %1590 = vmatpush1.bf16.msra.mxu0 0
    %1591 = vmatprep.subr.bf16.mxu0 0
    %1592 = vmatpush1.bf16.msra.mxu0 0
    %1593 = vmatprep.mubr.bf16.mxu0 0
    %1594 = vmatmul.mubr.bf16.gmra.mrb[0].mxu0 %v1534
    %v1595 = vpop.f32.mrb[0].mxu0
    %v1596 = vadd.f32 %v1515, %v1595
    %v1597 = vpop.f32.mrb[0].mxu0
    %v1598 = vpop.f32.mrb[0].mxu0
    %v1599 = vadd.f32 %v1515, %v1598
    %v1600 = vpop.f32.mrb[0].mxu0
    %1601 = vmatprep.mubr.bf16.mxu0 0
    %1602 = vmatmul.mubr.bf16.gmra.mrb[0].mxu0 %v1537
    %v1603 = vpop.f32.mrb[0].mxu0
    %v1604 = vadd.f32 %v1515, %v1603
    %v1605 = vpop.f32.mrb[0].mxu0
    %v1606 = vpop.f32.mrb[0].mxu0
    %v1607 = vadd.f32 %v1515, %v1606
    %v1608 = vpop.f32.mrb[0].mxu0
    %1609 = vmatprep.mubr.bf16.mxu0 0
    %1610 = vmatmul.mubr.bf16.gmra.mrb[0].mxu0 %v1540
    %v1611 = vpop.f32.mrb[0].mxu0
    %v1612 = vadd.f32 %v1515, %v1611
    %v1613 = vpop.f32.mrb[0].mxu0
    %v1614 = vpop.f32.mrb[0].mxu0
    %v1615 = vadd.f32 %v1515, %v1614
    %v1616 = vpop.f32.mrb[0].mxu0
    %1617 = vmatprep.mubr.bf16.mxu0 0
    %1618 = vmatmul.mubr.bf16.gmra.mrb[0].mxu0 %v1543
    %v1619 = vpop.f32.mrb[0].mxu0
    %v1620 = vadd.f32 %v1515, %v1619
    %v1621 = vpop.f32.mrb[0].mxu0
    %v1622 = vpop.f32.mrb[0].mxu0
    %v1623 = vadd.f32 %v1515, %v1622
    %v1624 = vpop.f32.mrb[0].mxu0
    %1625 = vmatprep.mubr.bf16.mxu0 0
    %1626 = vmatmul.mubr.bf16.gmra.mrb[0].mxu0 %v1546
    %v1627 = vpop.f32.mrb[0].mxu0
    %v1628 = vadd.f32 %v1515, %v1627
    %v1629 = vpop.f32.mrb[0].mxu0
    %v1630 = vpop.f32.mrb[0].mxu0
    %v1631 = vadd.f32 %v1515, %v1630
    %v1632 = vpop.f32.mrb[0].mxu0
    %1633 = vmatprep.mubr.bf16.mxu0 0
    %1634 = vmatmul.mubr.bf16.gmra.mrb[0].mxu0 %v1549
    %v1635 = vpop.f32.mrb[0].mxu0
    %v1636 = vadd.f32 %v1515, %v1635
    %v1637 = vpop.f32.mrb[0].mxu0
    %v1638 = vpop.f32.mrb[0].mxu0
    %v1639 = vadd.f32 %v1515, %v1638
    %v1640 = vpop.f32.mrb[0].mxu0
    %1641 = vmatprep.mubr.bf16.mxu0 0
    %1642 = vmatmul.mubr.bf16.gmra.mrb[0].mxu0 %v1552
    %v1643 = vpop.f32.mrb[0].mxu0
    %v1644 = vadd.f32 %v1515, %v1643
    %v1645 = vpop.f32.mrb[0].mxu0
    %v1646 = vpop.f32.mrb[0].mxu0
    %v1647 = vadd.f32 %v1515, %v1646
    %v1648 = vpop.f32.mrb[0].mxu0
    %1649 = vmatprep.mubr.bf16.mxu0 0
    %1650 = vmatmul.mubr.bf16.gmra.mrb[0].mxu0 %v1555
    %v1651 = vpop.f32.mrb[0].mxu0
    %v1652 = vadd.f32 %v1515, %v1651
    %v1653 = vpop.f32.mrb[0].mxu0
    %v1654 = vpop.f32.mrb[0].mxu0
    %v1655 = vadd.f32 %v1515, %v1654
    %v1656 = vpop.f32.mrb[0].mxu0
    %1657 = vdwg.mxu0
    %v1658 = vmax.f32 %v1596, 0.0
    %v1659 = vmax.f32 %v1599, 0.0
    %v1660 = vmax.f32 %v1604, 0.0
    %v1661 = vmax.f32 %v1607, 0.0
    %v1662 = vmax.f32 %v1612, 0.0
    %v1663 = vmax.f32 %v1615, 0.0
    %v1664 = vmax.f32 %v1620, 0.0
    %v1665 = vmax.f32 %v1623, 0.0
    %v1666 = vmax.f32 %v1628, 0.0
    %v1667 = vmax.f32 %v1631, 0.0
    %v1668 = vmax.f32 %v1636, 0.0
    %v1669 = vmax.f32 %v1639, 0.0
    %v1670 = vmax.f32 %v1644, 0.0
    %v1671 = vmax.f32 %v1647, 0.0
    %v1672 = vmax.f32 %v1652, 0.0
    %v1673 = vmax.f32 %v1655, 0.0
    %v1674 = vpack.c.bf16 %v1659, %v1658
    %v1675 = vpack.c.bf16 %v1661, %v1660
    %v1676 = vpack.c.bf16 %v1663, %v1662
    %v1677 = vpack.c.bf16 %v1665, %v1664
    %v1678 = vpack.c.bf16 %v1667, %v1666
    %v1679 = vpack.c.bf16 %v1669, %v1668
    %v1680 = vpack.c.bf16 %v1671, %v1670
    %v1681 = vpack.c.bf16 %v1673, %v1672
    %1682 = vst.msk [vmem:[#allocation3 + $0x8] sm:$0xff] %vm30, %v1674
    %1683 = vst.msk [vmem:[#allocation3 + $0x10] sm:$0xff] %vm30, %v1675
    %1684 = vst.msk [vmem:[#allocation3 + $0x18] sm:$0xff] %vm30, %v1676
    %1685 = vst.msk [vmem:[#allocation3 + $0x20] sm:$0xff] %vm30, %v1677
    %1686 = vst.msk [vmem:[#allocation3 + $0x38] sm:$0xff] %vm30, %v1678
    %1687 = vst.msk [vmem:[#allocation3 + $0x40] sm:$0xff] %vm30, %v1679
    %1688 = vst.msk [vmem:[#allocation3 + $0x48] sm:$0xff] %vm30, %v1680
    %1689 = vst.msk [vmem:[#allocation3 + $0x50] sm:$0xff] %vm30, %v1681
    %v1690 = vld [vmem:[%s3] sm:$0xf]
    %v1691 = vld [vmem:[%s3 + $0x4] sm:$0xf]
    %v1692 = vld [vmem:[%s3 + $0x8] sm:$0xf]
    %v1693 = vld [vmem:[%s3 + $0xc] sm:$0xf]
    %v1694 = vld [vmem:[%s3 + $0x10] sm:$0xf]
    %v1695 = vld [vmem:[%s3 + $0x14] sm:$0xf]
    %v1696 = vld [vmem:[%s3 + $0x18] sm:$0xf]
    %v1697 = vld [vmem:[%s3 + $0x1c] sm:$0xf]
    %v1698 = vld [vmem:[%s3 + $0x20] sm:$0xf]
    %v1699 = vld [vmem:[%s4] sm:$0x1]
    %v1700 = vld [vmem:[#allocation3] sm:$0xf8]
    %v1701 = vld [vmem:[#allocation3 + $0x8] sm:$0xff]
    %v1702 = vld [vmem:[#allocation3 + $0x10] sm:$0xff]
    %v1703 = vld [vmem:[#allocation3 + $0x18] sm:$0xff]
    %v1704 = vld [vmem:[#allocation3 + $0x20] sm:$0xf]
    %v1705 = vld [vmem:[#allocation3 + $0x30] sm:$0xf8]
    %v1706 = vld [vmem:[#allocation3 + $0x38] sm:$0xff]
    %v1707 = vld [vmem:[#allocation3 + $0x40] sm:$0xff]
    %v1708 = vld [vmem:[#allocation3 + $0x48] sm:$0xff]
    %v1709 = vld [vmem:[#allocation3 + $0x50] sm:$0xf]
    %v1710 = vsel %vm614, %v1700, 0
    %v1711 = vsel %vm615, %v1701, 0
    %v1712 = vsel %vm616, %v1702, 0
    %v1713 = vsel %vm617, %v1703, 0
    %v1714 = vsel %vm618, %v1704, 0
    %v1715 = vsel %vm614, %v1705, 0
    %v1716 = vsel %vm615, %v1706, 0
    %v1717 = vsel %vm616, %v1707, 0
    %v1718 = vsel %vm617, %v1708, 0
    %v1719 = vsel %vm618, %v1709, 0
    %v1720 = vld [vmem:[#allocation3] sm:$0xf0]
    %v1721 = vld [vmem:[#allocation3 + $0x30] sm:$0xf0]
    %v1722 = vld [vmem:[#allocation3 + $0x20] sm:$0x1f]
    %v1723 = vld [vmem:[#allocation3 + $0x50] sm:$0x1f]
    %v1724 = vsel %vm713, %v1720, 0
    %v1725 = vsel %vm714, %v1701, 0
    %v1726 = vsel %vm715, %v1702, 0
    %v1727 = vsel %vm716, %v1703, 0
    %v1728 = vsel %vm717, %v1722, 0
    %v1729 = vsel %vm713, %v1721, 0
    %v1730 = vsel %vm714, %v1706, 0
    %v1731 = vsel %vm715, %v1707, 0
    %v1732 = vsel %vm716, %v1708, 0
    %v1733 = vsel %vm717, %v1723, 0
    %v1734 = vld [vmem:[#allocation3] sm:$0x80]
    %v1735 = vld [vmem:[#allocation3 + $0x20] sm:$0xff]
    %v1736 = vld [vmem:[#allocation3 + $0x30] sm:$0x80]
    %v1737 = vld [vmem:[#allocation3 + $0x50] sm:$0xff]
    %v1738 = vsel %vm744, %v1734, 0
    %v1739 = vsel %vm745, %v1701, 0
    %v1740 = vsel %vm746, %v1702, 0
    %v1741 = vsel %vm747, %v1703, 0
    %v1742 = vsel %vm748, %v1735, 0
    %v1743 = vsel %vm744, %v1736, 0
    %v1744 = vsel %vm745, %v1706, 0
    %v1745 = vsel %vm746, %v1707, 0
    %v1746 = vsel %vm747, %v1708, 0
    %v1747 = vsel %vm748, %v1737, 0
    %v1748 = vld [vmem:[#allocation3 + $0x28] sm:$0x1]
    %v1749 = vld [vmem:[#allocation3 + $0x58] sm:$0x1]
    %v1750 = vsel %vm773, %v1701, 0
    %v1751 = vsel %vm774, %v1702, 0
    %v1752 = vsel %vm775, %v1703, 0
    %v1753 = vsel %vm776, %v1735, 0
    %v1754 = vsel %vm777, %v1748, 0
    %v1755 = vsel %vm773, %v1706, 0
    %v1756 = vsel %vm774, %v1707, 0
    %v1757 = vsel %vm775, %v1708, 0
    %v1758 = vsel %vm776, %v1737, 0
    %v1759 = vsel %vm777, %v1749, 0
    %v1760 = vld [vmem:[#allocation3 + $0x8] sm:$0xf8]
    %v1761 = vld [vmem:[#allocation3 + $0x28] sm:$0xf]
    %v1762 = vld [vmem:[#allocation3 + $0x38] sm:$0xf8]
    %v1763 = vld [vmem:[#allocation3 + $0x58] sm:$0xf]
    %v1764 = vsel %vm614, %v1760, 0
    %v1765 = vsel %vm615, %v1702, 0
    %v1766 = vsel %vm616, %v1703, 0
    %v1767 = vsel %vm617, %v1735, 0
    %v1768 = vsel %vm618, %v1761, 0
    %v1769 = vsel %vm614, %v1762, 0
    %v1770 = vsel %vm615, %v1707, 0
    %v1771 = vsel %vm616, %v1708, 0
    %v1772 = vsel %vm617, %v1737, 0
    %v1773 = vsel %vm618, %v1763, 0
    %v1774 = vld [vmem:[#allocation3 + $0x8] sm:$0xf0]
    %v1775 = vld [vmem:[#allocation3 + $0x38] sm:$0xf0]
    %v1776 = vld [vmem:[#allocation3 + $0x28] sm:$0x1f]
    %v1777 = vld [vmem:[#allocation3 + $0x58] sm:$0x1f]
    %v1778 = vsel %vm713, %v1774, 0
    %v1779 = vsel %vm714, %v1702, 0
    %v1780 = vsel %vm715, %v1703, 0
    %v1781 = vsel %vm716, %v1735, 0
    %v1782 = vsel %vm717, %v1776, 0
    %v1783 = vsel %vm713, %v1775, 0
    %v1784 = vsel %vm714, %v1707, 0
    %v1785 = vsel %vm715, %v1708, 0
    %v1786 = vsel %vm716, %v1737, 0
    %v1787 = vsel %vm717, %v1777, 0
    %v1789 = vshrl.u32 %v1720, 16
    %v1791 = vshll.u32 %v1720, 16
    %v1793 = vrot.slane %v1791, 1
    %v1794 = vor.u32 %v1789, %v1793
    %v1796 = vshll.u32 %v1701, 16
    %v1798 = vrot.slane %v1796, 1
    %v1799 = vsel %vm732, %v1794, %v1798
    %v1800 = vshrl.u32 %v1701, 16
    %v1802 = vor.u32 %v1800, %v1798
    %v1804 = vshll.u32 %v1702, 16
    %v1806 = vrot.slane %v1804, 1
    %v1807 = vsel %vm732, %v1802, %v1806
    %v1808 = vshrl.u32 %v1702, 16
    %v1810 = vor.u32 %v1808, %v1806
    %v1812 = vshll.u32 %v1703, 16
    %v1814 = vrot.slane %v1812, 1
    %v1815 = vsel %vm732, %v1810, %v1814
    %v1816 = vshrl.u32 %v1703, 16
    %v1818 = vor.u32 %v1816, %v1814
    %v1820 = vshll.u32 %v1704, 16
    %v1822 = vrot.slane %v1820, 1
    %v1823 = vsel %vm732, %v1818, %v1822
    %v1824 = vshrl.u32 %v1704, 16
    %v1826 = vor.u32 %v1824, %v1822
    %v1828 = vshrl.u32 %v1721, 16
    %v1830 = vshll.u32 %v1721, 16
    %v1832 = vrot.slane %v1830, 1
    %v1833 = vor.u32 %v1828, %v1832
    %v1835 = vshll.u32 %v1706, 16
    %v1837 = vrot.slane %v1835, 1
    %v1838 = vsel %vm732, %v1833, %v1837
    %v1839 = vshrl.u32 %v1706, 16
    %v1841 = vor.u32 %v1839, %v1837
    %v1843 = vshll.u32 %v1707, 16
    %v1845 = vrot.slane %v1843, 1
    %v1846 = vsel %vm732, %v1841, %v1845
    %v1847 = vshrl.u32 %v1707, 16
    %v1849 = vor.u32 %v1847, %v1845
    %v1851 = vshll.u32 %v1708, 16
    %v1853 = vrot.slane %v1851, 1
    %v1854 = vsel %vm732, %v1849, %v1853
    %v1855 = vshrl.u32 %v1708, 16
    %v1857 = vor.u32 %v1855, %v1853
    %v1859 = vshll.u32 %v1709, 16
    %v1861 = vrot.slane %v1859, 1
    %v1862 = vsel %vm732, %v1857, %v1861
    %v1863 = vshrl.u32 %v1709, 16
    %v1865 = vor.u32 %v1863, %v1861
    %1866 = vrot.lane.b32.xlu0 %v1799, 8
    %v1867 = vpop.permute.xlu0 %1866
    %1868 = vrot.lane.b32.xlu0 %v1807, 8
    %v1869 = vpop.permute.xlu0 %1868
    %1870 = vrot.lane.b32.xlu0 %v1815, 8
    %v1871 = vpop.permute.xlu0 %1870
    %1872 = vrot.lane.b32.xlu0 %v1823, 8
    %v1873 = vpop.permute.xlu0 %1872
    %1874 = vrot.lane.b32.xlu0 %v1826, 8
    %v1875 = vpop.permute.xlu0 %1874
    %1876 = vrot.lane.b32.xlu0 %v1838, 8
    %v1877 = vpop.permute.xlu0 %1876
    %1878 = vrot.lane.b32.xlu0 %v1846, 8
    %v1879 = vpop.permute.xlu0 %1878
    %1880 = vrot.lane.b32.xlu0 %v1854, 8
    %v1881 = vpop.permute.xlu0 %1880
    %1882 = vrot.lane.b32.xlu0 %v1862, 8
    %v1883 = vpop.permute.xlu0 %1882
    %1884 = vrot.lane.b32.xlu0 %v1865, 8
    %v1885 = vpop.permute.xlu0 %1884
    %v1896 = vrot.slane %v1724, 1
    %v1897 = vrot.slane %v1725, 1
    %v1898 = vsel %vm924, %v1896, %v1897
    %v1899 = vrot.slane %v1726, 1
    %v1900 = vsel %vm924, %v1897, %v1899
    %v1901 = vrot.slane %v1727, 1
    %v1902 = vsel %vm924, %v1899, %v1901
    %v1903 = vrot.slane %v1728, 1
    %v1904 = vsel %vm924, %v1901, %v1903
    %v1905 = vrot.slane %v1729, 1
    %v1906 = vrot.slane %v1730, 1
    %v1907 = vsel %vm924, %v1905, %v1906
    %v1908 = vrot.slane %v1731, 1
    %v1909 = vsel %vm924, %v1906, %v1908
    %v1910 = vrot.slane %v1732, 1
    %v1911 = vsel %vm924, %v1908, %v1910
    %v1912 = vrot.slane %v1733, 1
    %v1913 = vsel %vm924, %v1910, %v1912
    %1914 = vrot.lane.b32.xlu0 %v1898, 16
    %v1915 = vpop.permute.xlu0 %1914
    %1916 = vrot.lane.b32.xlu0 %v1900, 16
    %v1917 = vpop.permute.xlu0 %1916
    %1918 = vrot.lane.b32.xlu0 %v1902, 16
    %v1919 = vpop.permute.xlu0 %1918
    %1920 = vrot.lane.b32.xlu0 %v1904, 16
    %v1921 = vpop.permute.xlu0 %1920
    %1922 = vrot.lane.b32.xlu0 %v1903, 16
    %v1923 = vpop.permute.xlu0 %1922
    %1924 = vrot.lane.b32.xlu0 %v1907, 16
    %v1925 = vpop.permute.xlu0 %1924
    %1926 = vrot.lane.b32.xlu0 %v1909, 16
    %v1927 = vpop.permute.xlu0 %1926
    %1928 = vrot.lane.b32.xlu0 %v1911, 16
    %v1929 = vpop.permute.xlu0 %1928
    %1930 = vrot.lane.b32.xlu0 %v1913, 16
    %v1931 = vpop.permute.xlu0 %1930
    %1932 = vrot.lane.b32.xlu0 %v1912, 16
    %v1933 = vpop.permute.xlu0 %1932
    %v1944 = vrot.slane %v1738, 4
    %v1945 = vrot.slane %v1739, 4
    %v1946 = vsel %vm973, %v1944, %v1945
    %v1947 = vrot.slane %v1740, 4
    %v1948 = vsel %vm973, %v1945, %v1947
    %v1949 = vrot.slane %v1741, 4
    %v1950 = vsel %vm973, %v1947, %v1949
    %v1951 = vrot.slane %v1742, 4
    %v1952 = vsel %vm973, %v1949, %v1951
    %v1953 = vrot.slane %v1743, 4
    %v1954 = vrot.slane %v1744, 4
    %v1955 = vsel %vm973, %v1953, %v1954
    %v1956 = vrot.slane %v1745, 4
    %v1957 = vsel %vm973, %v1954, %v1956
    %v1958 = vrot.slane %v1746, 4
    %v1959 = vsel %vm973, %v1956, %v1958
    %v1960 = vrot.slane %v1747, 4
    %v1961 = vsel %vm973, %v1958, %v1960
    %1962 = vrot.lane.b32.xlu0 %v1946, 24
    %v1963 = vpop.permute.xlu0 %1962
    %1964 = vrot.lane.b32.xlu0 %v1948, 24
    %v1965 = vpop.permute.xlu0 %1964
    %1966 = vrot.lane.b32.xlu0 %v1950, 24
    %v1967 = vpop.permute.xlu0 %1966
    %1968 = vrot.lane.b32.xlu0 %v1952, 24
    %v1969 = vpop.permute.xlu0 %1968
    %1970 = vrot.lane.b32.xlu0 %v1951, 24
    %v1971 = vpop.permute.xlu0 %1970
    %1972 = vrot.lane.b32.xlu0 %v1955, 24
    %v1973 = vpop.permute.xlu0 %1972
    %1974 = vrot.lane.b32.xlu0 %v1957, 24
    %v1975 = vpop.permute.xlu0 %1974
    %1976 = vrot.lane.b32.xlu0 %v1959, 24
    %v1977 = vpop.permute.xlu0 %1976
    %1978 = vrot.lane.b32.xlu0 %v1961, 24
    %v1979 = vpop.permute.xlu0 %1978
    %1980 = vrot.lane.b32.xlu0 %v1960, 24
    %v1981 = vpop.permute.xlu0 %1980
    %v1982 = vrot.slane %v1800, 4
    %v1983 = vrot.slane %v1796, 5
    %v1984 = vor.u32 %v1982, %v1983
    %v1985 = vrot.slane %v1808, 4
    %v1986 = vrot.slane %v1804, 5
    %v1987 = vor.u32 %v1985, %v1986
    %v1988 = vsel %vm578, %v1984, %v1987
    %v1989 = vrot.slane %v1816, 4
    %v1990 = vrot.slane %v1812, 5
    %v1991 = vor.u32 %v1989, %v1990
    %v1992 = vsel %vm578, %v1987, %v1991
    %v1994 = vshrl.u32 %v1735, 16
    %v1996 = vrot.slane %v1994, 4
    %v1997 = vshll.u32 %v1735, 16
    %v1999 = vrot.slane %v1997, 5
    %v2000 = vor.u32 %v1996, %v1999
    %v2001 = vsel %vm578, %v1991, %v2000
    %v2002 = vrot.slane %v1839, 4
    %v2003 = vrot.slane %v1835, 5
    %v2004 = vor.u32 %v2002, %v2003
    %v2005 = vrot.slane %v1847, 4
    %v2006 = vrot.slane %v1843, 5
    %v2007 = vor.u32 %v2005, %v2006
    %v2008 = vsel %vm578, %v2004, %v2007
    %v2009 = vrot.slane %v1855, 4
    %v2010 = vrot.slane %v1851, 5
    %v2011 = vor.u32 %v2009, %v2010
    %v2012 = vsel %vm578, %v2007, %v2011
    %v2014 = vshrl.u32 %v1737, 16
    %v2016 = vrot.slane %v2014, 4
    %v2017 = vshll.u32 %v1737, 16
    %v2019 = vrot.slane %v2017, 5
    %v2020 = vor.u32 %v2016, %v2019
    %v2021 = vsel %vm578, %v2011, %v2020
    %2022 = vrot.lane.b32.xlu0 %v1984, 32
    %v2023 = vpop.permute.xlu0 %2022
    %2024 = vrot.lane.b32.xlu0 %v1988, 32
    %v2025 = vpop.permute.xlu0 %2024
    %2026 = vrot.lane.b32.xlu0 %v1992, 32
    %v2027 = vpop.permute.xlu0 %2026
    %2028 = vrot.lane.b32.xlu0 %v2001, 32
    %v2029 = vpop.permute.xlu0 %2028
    %2030 = vrot.lane.b32.xlu0 %v2000, 32
    %v2031 = vpop.permute.xlu0 %2030
    %2032 = vrot.lane.b32.xlu0 %v2004, 32
    %v2033 = vpop.permute.xlu0 %2032
    %2034 = vrot.lane.b32.xlu0 %v2008, 32
    %v2035 = vpop.permute.xlu0 %2034
    %2036 = vrot.lane.b32.xlu0 %v2012, 32
    %v2037 = vpop.permute.xlu0 %2036
    %2038 = vrot.lane.b32.xlu0 %v2021, 32
    %v2039 = vpop.permute.xlu0 %2038
    %2040 = vrot.lane.b32.xlu0 %v2020, 32
    %v2041 = vpop.permute.xlu0 %2040
    %v2052 = vrot.slane %v1750, 5
    %v2053 = vrot.slane %v1751, 5
    %v2054 = vsel %vm1082, %v2052, %v2053
    %v2055 = vrot.slane %v1752, 5
    %v2056 = vsel %vm1082, %v2053, %v2055
    %v2057 = vrot.slane %v1753, 5
    %v2058 = vsel %vm1082, %v2055, %v2057
    %v2059 = vrot.slane %v1754, 5
    %v2060 = vsel %vm1082, %v2057, %v2059
    %v2061 = vrot.slane %v1755, 5
    %v2062 = vrot.slane %v1756, 5
    %v2063 = vsel %vm1082, %v2061, %v2062
    %v2064 = vrot.slane %v1757, 5
    %v2065 = vsel %vm1082, %v2062, %v2064
    %v2066 = vrot.slane %v1758, 5
    %v2067 = vsel %vm1082, %v2064, %v2066
    %v2068 = vrot.slane %v1759, 5
    %v2069 = vsel %vm1082, %v2066, %v2068
    %2070 = vrot.lane.b32.xlu0 %v2052, 40
    %v2071 = vpop.permute.xlu0 %2070
    %2072 = vrot.lane.b32.xlu0 %v2054, 40
    %v2073 = vpop.permute.xlu0 %2072
    %2074 = vrot.lane.b32.xlu0 %v2056, 40
    %v2075 = vpop.permute.xlu0 %2074
    %2076 = vrot.lane.b32.xlu0 %v2058, 40
    %v2077 = vpop.permute.xlu0 %2076
    %2078 = vrot.lane.b32.xlu0 %v2060, 40
    %v2079 = vpop.permute.xlu0 %2078
    %2080 = vrot.lane.b32.xlu0 %v2061, 40
    %v2081 = vpop.permute.xlu0 %2080
    %2082 = vrot.lane.b32.xlu0 %v2063, 40
    %v2083 = vpop.permute.xlu0 %2082
    %2084 = vrot.lane.b32.xlu0 %v2065, 40
    %v2085 = vpop.permute.xlu0 %2084
    %2086 = vrot.lane.b32.xlu0 %v2067, 40
    %v2087 = vpop.permute.xlu0 %2086
    %2088 = vrot.lane.b32.xlu0 %v2069, 40
    %v2089 = vpop.permute.xlu0 %2088
    %2100 = vrot.lane.b32.xlu0 %v1764, 48
    %v2101 = vpop.permute.xlu0 %2100
    %2102 = vrot.lane.b32.xlu0 %v1765, 48
    %v2103 = vpop.permute.xlu0 %2102
    %2104 = vrot.lane.b32.xlu0 %v1766, 48
    %v2105 = vpop.permute.xlu0 %2104
    %2106 = vrot.lane.b32.xlu0 %v1767, 48
    %v2107 = vpop.permute.xlu0 %2106
    %2108 = vrot.lane.b32.xlu0 %v1768, 48
    %v2109 = vpop.permute.xlu0 %2108
    %2110 = vrot.lane.b32.xlu0 %v1769, 48
    %v2111 = vpop.permute.xlu0 %2110
    %2112 = vrot.lane.b32.xlu0 %v1770, 48
    %v2113 = vpop.permute.xlu0 %2112
    %2114 = vrot.lane.b32.xlu0 %v1771, 48
    %v2115 = vpop.permute.xlu0 %2114
    %2116 = vrot.lane.b32.xlu0 %v1772, 48
    %v2117 = vpop.permute.xlu0 %2116
    %2118 = vrot.lane.b32.xlu0 %v1773, 48
    %v2119 = vpop.permute.xlu0 %2118
    %v2121 = vshrl.u32 %v1774, 16
    %v2123 = vshll.u32 %v1774, 16
    %v2125 = vrot.slane %v2123, 1
    %v2126 = vor.u32 %v2121, %v2125
    %v2127 = vsel %vm732, %v2126, %v1806
    %v2128 = vrot.slane %v1997, 1
    %v2129 = vsel %vm732, %v1818, %v2128
    %v2130 = vor.u32 %v1994, %v2128
    %v2132 = vshll.u32 %v1761, 16
    %v2134 = vrot.slane %v2132, 1
    %v2135 = vsel %vm732, %v2130, %v2134
    %v2136 = vshrl.u32 %v1761, 16
    %v2138 = vor.u32 %v2136, %v2134
    %v2140 = vshrl.u32 %v1775, 16
    %v2142 = vshll.u32 %v1775, 16
    %v2144 = vrot.slane %v2142, 1
    %v2145 = vor.u32 %v2140, %v2144
    %v2146 = vsel %vm732, %v2145, %v1845
    %v2147 = vrot.slane %v2017, 1
    %v2148 = vsel %vm732, %v1857, %v2147
    %v2149 = vor.u32 %v2014, %v2147
    %v2151 = vshll.u32 %v1763, 16
    %v2153 = vrot.slane %v2151, 1
    %v2154 = vsel %vm732, %v2149, %v2153
    %v2155 = vshrl.u32 %v1763, 16
    %v2157 = vor.u32 %v2155, %v2153
    %2158 = vrot.lane.b32.xlu0 %v2127, 56
    %v2159 = vpop.permute.xlu0 %2158
    %2160 = vrot.lane.b32.xlu0 %v1815, 56
    %v2161 = vpop.permute.xlu0 %2160
    %2162 = vrot.lane.b32.xlu0 %v2129, 56
    %v2163 = vpop.permute.xlu0 %2162
    %2164 = vrot.lane.b32.xlu0 %v2135, 56
    %v2165 = vpop.permute.xlu0 %2164
    %2166 = vrot.lane.b32.xlu0 %v2138, 56
    %v2167 = vpop.permute.xlu0 %2166
    %2168 = vrot.lane.b32.xlu0 %v2146, 56
    %v2169 = vpop.permute.xlu0 %2168
    %2170 = vrot.lane.b32.xlu0 %v1854, 56
    %v2171 = vpop.permute.xlu0 %2170
    %2172 = vrot.lane.b32.xlu0 %v2148, 56
    %v2173 = vpop.permute.xlu0 %2172
    %2174 = vrot.lane.b32.xlu0 %v2154, 56
    %v2175 = vpop.permute.xlu0 %2174
    %2176 = vrot.lane.b32.xlu0 %v2157, 56
    %v2177 = vpop.permute.xlu0 %2176
    %v2188 = vrot.slane %v1778, 1
    %v2189 = vrot.slane %v1779, 1
    %v2190 = vsel %vm924, %v2188, %v2189
    %v2191 = vrot.slane %v1780, 1
    %v2192 = vsel %vm924, %v2189, %v2191
    %v2193 = vrot.slane %v1781, 1
    %v2194 = vsel %vm924, %v2191, %v2193
    %v2195 = vrot.slane %v1782, 1
    %v2196 = vsel %vm924, %v2193, %v2195
    %v2197 = vrot.slane %v1783, 1
    %v2198 = vrot.slane %v1784, 1
    %v2199 = vsel %vm924, %v2197, %v2198
    %v2200 = vrot.slane %v1785, 1
    %v2201 = vsel %vm924, %v2198, %v2200
    %v2202 = vrot.slane %v1786, 1
    %v2203 = vsel %vm924, %v2200, %v2202
    %v2204 = vrot.slane %v1787, 1
    %v2205 = vsel %vm924, %v2202, %v2204
    %2206 = vrot.lane.b32.xlu0 %v2190, 64
    %v2207 = vpop.permute.xlu0 %2206
    %2208 = vrot.lane.b32.xlu0 %v2192, 64
    %v2209 = vpop.permute.xlu0 %2208
    %2210 = vrot.lane.b32.xlu0 %v2194, 64
    %v2211 = vpop.permute.xlu0 %2210
    %2212 = vrot.lane.b32.xlu0 %v2196, 64
    %v2213 = vpop.permute.xlu0 %2212
    %2214 = vrot.lane.b32.xlu0 %v2195, 64
    %v2215 = vpop.permute.xlu0 %2214
    %2216 = vrot.lane.b32.xlu0 %v2199, 64
    %v2217 = vpop.permute.xlu0 %2216
    %2218 = vrot.lane.b32.xlu0 %v2201, 64
    %v2219 = vpop.permute.xlu0 %2218
    %2220 = vrot.lane.b32.xlu0 %v2203, 64
    %v2221 = vpop.permute.xlu0 %2220
    %2222 = vrot.lane.b32.xlu0 %v2205, 64
    %v2223 = vpop.permute.xlu0 %2222
    %2224 = vrot.lane.b32.xlu0 %v2204, 64
    %v2225 = vpop.permute.xlu0 %2224
    %v2228 = vsel %vm30, %v1710, %v1867
    %v2231 = vsel %vm30, %v1711, %v1869
    %v2234 = vsel %vm30, %v1712, %v1871
    %v2237 = vsel %vm30, %v1713, %v1873
    %v2240 = vsel %vm30, %v1714, %v1875
    %v2243 = vsel %vm30, %v1715, %v1877
    %v2246 = vsel %vm30, %v1716, %v1879
    %v2249 = vsel %vm30, %v1717, %v1881
    %v2252 = vsel %vm30, %v1718, %v1883
    %v2255 = vsel %vm30, %v1719, %v1885
    %v2257 = vsel %vm1328, %v2228, %v1915
    %v2259 = vsel %vm1328, %v2231, %v1917
    %v2261 = vsel %vm1328, %v2234, %v1919
    %v2263 = vsel %vm1328, %v2237, %v1921
    %v2265 = vsel %vm1328, %v2240, %v1923
    %v2267 = vsel %vm1328, %v2243, %v1925
    %v2269 = vsel %vm1328, %v2246, %v1927
    %v2271 = vsel %vm1328, %v2249, %v1929
    %v2273 = vsel %vm1328, %v2252, %v1931
    %v2275 = vsel %vm1328, %v2255, %v1933
    %v2277 = vsel %vm1370, %v2257, %v1963
    %v2279 = vsel %vm1370, %v2259, %v1965
    %v2281 = vsel %vm1370, %v2261, %v1967
    %v2283 = vsel %vm1370, %v2263, %v1969
    %v2285 = vsel %vm1370, %v2265, %v1971
    %v2287 = vsel %vm1370, %v2267, %v1973
    %v2289 = vsel %vm1370, %v2269, %v1975
    %v2291 = vsel %vm1370, %v2271, %v1977
    %v2293 = vsel %vm1370, %v2273, %v1979
    %v2295 = vsel %vm1370, %v2275, %v1981
    %v2297 = vsel %vm1412, %v2277, %v2023
    %v2299 = vsel %vm1412, %v2279, %v2025
    %v2301 = vsel %vm1412, %v2281, %v2027
    %v2303 = vsel %vm1412, %v2283, %v2029
    %v2305 = vsel %vm1412, %v2285, %v2031
    %v2307 = vsel %vm1412, %v2287, %v2033
    %v2309 = vsel %vm1412, %v2289, %v2035
    %v2311 = vsel %vm1412, %v2291, %v2037
    %v2313 = vsel %vm1412, %v2293, %v2039
    %v2315 = vsel %vm1412, %v2295, %v2041
    %vm2316 = vcmask 326656
    %v2318 = vsel %vm2316, %v2297, %v2071
    %v2320 = vsel %vm2316, %v2299, %v2073
    %v2322 = vsel %vm2316, %v2301, %v2075
    %v2324 = vsel %vm2316, %v2303, %v2077
    %v2326 = vsel %vm2316, %v2305, %v2079
    %v2328 = vsel %vm2316, %v2307, %v2081
    %v2330 = vsel %vm2316, %v2309, %v2083
    %v2332 = vsel %vm2316, %v2311, %v2085
    %v2334 = vsel %vm2316, %v2313, %v2087
    %v2336 = vsel %vm2316, %v2315, %v2089
    %vm2337 = vcmask 392192
    %v2339 = vsel %vm2337, %v2318, %v2101
    %v2341 = vsel %vm2337, %v2320, %v2103
    %v2343 = vsel %vm2337, %v2322, %v2105
    %v2345 = vsel %vm2337, %v2324, %v2107
    %v2347 = vsel %vm2337, %v2326, %v2109
    %v2349 = vsel %vm2337, %v2328, %v2111
    %v2351 = vsel %vm2337, %v2330, %v2113
    %v2353 = vsel %vm2337, %v2332, %v2115
    %v2355 = vsel %vm2337, %v2334, %v2117
    %v2357 = vsel %vm2337, %v2336, %v2119
    %vm2358 = vcmask 457728
    %v2360 = vsel %vm2358, %v2339, %v2159
    %v2362 = vsel %vm2358, %v2341, %v2161
    %v2364 = vsel %vm2358, %v2343, %v2163
    %v2366 = vsel %vm2358, %v2345, %v2165
    %v2368 = vsel %vm2358, %v2347, %v2167
    %v2370 = vsel %vm2358, %v2349, %v2169
    %v2372 = vsel %vm2358, %v2351, %v2171
    %v2374 = vsel %vm2358, %v2353, %v2173
    %v2376 = vsel %vm2358, %v2355, %v2175
    %v2378 = vsel %vm2358, %v2357, %v2177
    %vm2379 = vcmask 523264
    %v2381 = vsel %vm2379, %v2360, %v2207
    %v2383 = vsel %vm2379, %v2362, %v2209
    %v2385 = vsel %vm2379, %v2364, %v2211
    %v2387 = vsel %vm2379, %v2366, %v2213
    %v2389 = vsel %vm2379, %v2368, %v2215
    %v2391 = vsel %vm2379, %v2370, %v2217
    %v2393 = vsel %vm2379, %v2372, %v2219
    %v2395 = vsel %vm2379, %v2374, %v2221
    %v2397 = vsel %vm2379, %v2376, %v2223
    %v2399 = vsel %vm2379, %v2378, %v2225
    %v2400 = vshrl.u32 %v2381, 16
    %v2402 = vrot.slane %v2400, 3
    %v2403 = vshll.u32 %v2381, 16
    %v2405 = vrot.slane %v2403, 4
    %v2406 = vor.u32 %v2402, %v2405
    %v2407 = vshrl.u32 %v2383, 16
    %v2409 = vrot.slane %v2407, 3
    %v2410 = vshll.u32 %v2383, 16
    %v2412 = vrot.slane %v2410, 4
    %v2413 = vor.u32 %v2409, %v2412
    %v2414 = vsel %vm677, %v2406, %v2413
    %v2415 = vshrl.u32 %v2385, 16
    %v2417 = vrot.slane %v2415, 3
    %v2418 = vshll.u32 %v2385, 16
    %v2420 = vrot.slane %v2418, 4
    %v2421 = vor.u32 %v2417, %v2420
    %v2422 = vsel %vm677, %v2413, %v2421
    %v2423 = vshrl.u32 %v2387, 16
    %v2425 = vrot.slane %v2423, 3
    %v2426 = vshll.u32 %v2387, 16
    %v2428 = vrot.slane %v2426, 4
    %v2429 = vor.u32 %v2425, %v2428
    %v2430 = vsel %vm677, %v2421, %v2429
    %v2431 = vshrl.u32 %v2389, 16
    %v2433 = vrot.slane %v2431, 3
    %v2434 = vshll.u32 %v2389, 16
    %v2436 = vrot.slane %v2434, 4
    %v2437 = vor.u32 %v2433, %v2436
    %v2438 = vsel %vm677, %v2429, %v2437
    %v2439 = vshrl.u32 %v2391, 16
    %v2441 = vrot.slane %v2439, 3
    %v2442 = vshll.u32 %v2391, 16
    %v2444 = vrot.slane %v2442, 4
    %v2445 = vor.u32 %v2441, %v2444
    %v2446 = vshrl.u32 %v2393, 16
    %v2448 = vrot.slane %v2446, 3
    %v2449 = vshll.u32 %v2393, 16
    %v2451 = vrot.slane %v2449, 4
    %v2452 = vor.u32 %v2448, %v2451
    %v2453 = vsel %vm677, %v2445, %v2452
    %v2454 = vshrl.u32 %v2395, 16
    %v2456 = vrot.slane %v2454, 3
    %v2457 = vshll.u32 %v2395, 16
    %v2459 = vrot.slane %v2457, 4
    %v2460 = vor.u32 %v2456, %v2459
    %v2461 = vsel %vm677, %v2452, %v2460
    %v2462 = vshrl.u32 %v2397, 16
    %v2464 = vrot.slane %v2462, 3
    %v2465 = vshll.u32 %v2397, 16
    %v2467 = vrot.slane %v2465, 4
    %v2468 = vor.u32 %v2464, %v2467
    %v2469 = vsel %vm677, %v2460, %v2468
    %v2470 = vshrl.u32 %v2399, 16
    %v2472 = vrot.slane %v2470, 3
    %v2473 = vshll.u32 %v2399, 16
    %v2475 = vrot.slane %v2473, 4
    %v2476 = vor.u32 %v2472, %v2475
    %v2477 = vsel %vm677, %v2468, %v2476
    %v2479 = vlaneseq
    %v2480 = vshrl.u32 %v2479, 7
    %v2481 = vsub.s32 0, %v2480
    %v2482 = vrot.slane %v1699, %v2481
    %v2493 = vunpack.c.l.b16 %v1690
    %v2494 = vunpack.c.l.b16 %v1691
    %v2495 = vunpack.c.l.b16 %v1692
    %v2496 = vunpack.c.l.b16 %v1693
    %v2497 = vunpack.c.l.b16 %v1694
    %v2498 = vunpack.c.l.b16 %v1695
    %v2499 = vunpack.c.l.b16 %v1696
    %v2500 = vunpack.c.l.b16 %v1697
    %v2501 = vunpack.c.l.b16 %v1698
    %v2502 = vpack.c.b16 %v2494, %v2493
    %v2503 = vpack.c.b16 %v2496, %v2495
    %v2504 = vpack.c.b16 %v2498, %v2497
    %v2505 = vpack.c.b16 %v2500, %v2499
    %v2506 = vpack.c.b16 %v2501, %v2501
    %vm2511 = vcmask 588800
    %v2513 = vsel %vm2511, %v2414, 0
    %v2516 = vsel %vm2511, %v2422, 0
    %v2519 = vsel %vm2511, %v2430, 0
    %v2522 = vsel %vm2511, %v2438, 0
    %v2525 = vsel %vm2511, %v2453, 0
    %v2528 = vsel %vm2511, %v2461, 0
    %v2531 = vsel %vm2511, %v2469, 0
    %v2534 = vsel %vm2511, %v2477, 0
    %vm2536 = vcmask 1043456
    %v2538 = vsel %vm2536, %v2506, 0
    %2540 = vmatprep.subr.bf16.mxu0 0
    %2541 = vmatpush1.bf16.msra.mxu0 %v2502
    %2542 = vmatprep.subr.bf16.mxu0 0
    %2543 = vmatpush1.bf16.msra.mxu0 %v2503
    %2544 = vmatprep.subr.bf16.mxu0 0
    %2545 = vmatpush1.bf16.msra.mxu0 %v2504
    %2546 = vmatprep.subr.bf16.mxu0 0
    %2547 = vmatpush1.bf16.msra.mxu0 %v2505
    %2548 = vmatprep.subr.bf16.mxu0 0
    %2549 = vmatpush1.bf16.msra.mxu0 %v2538
    %2550 = vmatprep.subr.bf16.mxu0 0
    %2551 = vmatpush1.bf16.msra.mxu0 0
    %2552 = vmatprep.subr.bf16.mxu0 0
    %2553 = vmatpush1.bf16.msra.mxu0 0
    %2554 = vmatprep.subr.bf16.mxu0 0
    %2555 = vmatpush1.bf16.msra.mxu0 0
    %2556 = vmatprep.subr.bf16.mxu0 0
    %2557 = vmatpush1.bf16.msra.mxu0 0
    %2558 = vmatprep.subr.bf16.mxu0 0
    %2559 = vmatpush1.bf16.msra.mxu0 0
    %2560 = vmatprep.subr.bf16.mxu0 0
    %2561 = vmatpush1.bf16.msra.mxu0 0
    %2562 = vmatprep.subr.bf16.mxu0 0
    %2563 = vmatpush1.bf16.msra.mxu0 0
    %2564 = vmatprep.subr.bf16.mxu0 0
    %2565 = vmatpush1.bf16.msra.mxu0 0
    %2566 = vmatprep.subr.bf16.mxu0 0
    %2567 = vmatpush1.bf16.msra.mxu0 0
    %2568 = vmatprep.subr.bf16.mxu0 0
    %2569 = vmatpush1.bf16.msra.mxu0 0
    %2570 = vmatprep.subr.bf16.mxu0 0
    %2571 = vmatpush1.bf16.msra.mxu0 0
    %2572 = vmatprep.mubr.bf16.mxu0 0
    %2573 = vmatmul.mubr.bf16.gmra.mrb[0].mxu0 %v2513
    %v2574 = vpop.f32.mrb[0].mxu0
    %v2575 = vadd.f32 %v2482, %v2574
    %v2576 = vpop.f32.mrb[0].mxu0
    %v2577 = vpop.f32.mrb[0].mxu0
    %v2578 = vadd.f32 %v2482, %v2577
    %v2579 = vpop.f32.mrb[0].mxu0
    %2580 = vmatprep.mubr.bf16.mxu0 0
    %2581 = vmatmul.mubr.bf16.gmra.mrb[0].mxu0 %v2516
    %v2582 = vpop.f32.mrb[0].mxu0
    %v2583 = vadd.f32 %v2482, %v2582
    %v2584 = vpop.f32.mrb[0].mxu0
    %v2585 = vpop.f32.mrb[0].mxu0
    %v2586 = vadd.f32 %v2482, %v2585
    %v2587 = vpop.f32.mrb[0].mxu0
    %2588 = vmatprep.mubr.bf16.mxu0 0
    %2589 = vmatmul.mubr.bf16.gmra.mrb[0].mxu0 %v2519
    %v2590 = vpop.f32.mrb[0].mxu0
    %v2591 = vadd.f32 %v2482, %v2590
    %v2592 = vpop.f32.mrb[0].mxu0
    %v2593 = vpop.f32.mrb[0].mxu0
    %v2594 = vadd.f32 %v2482, %v2593
    %v2595 = vpop.f32.mrb[0].mxu0
    %2596 = vmatprep.mubr.bf16.mxu0 0
    %2597 = vmatmul.mubr.bf16.gmra.mrb[0].mxu0 %v2522
    %v2598 = vpop.f32.mrb[0].mxu0
    %v2599 = vadd.f32 %v2482, %v2598
    %v2600 = vpop.f32.mrb[0].mxu0
    %v2601 = vpop.f32.mrb[0].mxu0
    %v2602 = vadd.f32 %v2482, %v2601
    %v2603 = vpop.f32.mrb[0].mxu0
    %2604 = vmatprep.mubr.bf16.mxu0 0
    %2605 = vmatmul.mubr.bf16.gmra.mrb[0].mxu0 %v2525
    %v2606 = vpop.f32.mrb[0].mxu0
    %v2607 = vadd.f32 %v2482, %v2606
    %v2608 = vpop.f32.mrb[0].mxu0
    %v2609 = vpop.f32.mrb[0].mxu0
    %v2610 = vadd.f32 %v2482, %v2609
    %v2611 = vpop.f32.mrb[0].mxu0
    %2612 = vmatprep.mubr.bf16.mxu0 0
    %2613 = vmatmul.mubr.bf16.gmra.mrb[0].mxu0 %v2528
    %v2614 = vpop.f32.mrb[0].mxu0
    %v2615 = vadd.f32 %v2482, %v2614
    %v2616 = vpop.f32.mrb[0].mxu0
    %v2617 = vpop.f32.mrb[0].mxu0
    %v2618 = vadd.f32 %v2482, %v2617
    %v2619 = vpop.f32.mrb[0].mxu0
    %2620 = vmatprep.mubr.bf16.mxu0 0
    %2621 = vmatmul.mubr.bf16.gmra.mrb[0].mxu0 %v2531
    %v2622 = vpop.f32.mrb[0].mxu0
    %v2623 = vadd.f32 %v2482, %v2622
    %v2624 = vpop.f32.mrb[0].mxu0
    %v2625 = vpop.f32.mrb[0].mxu0
    %v2626 = vadd.f32 %v2482, %v2625
    %v2627 = vpop.f32.mrb[0].mxu0
    %2628 = vmatprep.mubr.bf16.mxu0 0
    %2629 = vmatmul.mubr.bf16.gmra.mrb[0].mxu0 %v2534
    %v2630 = vpop.f32.mrb[0].mxu0
    %v2631 = vadd.f32 %v2482, %v2630
    %v2632 = vpop.f32.mrb[0].mxu0
    %v2633 = vpop.f32.mrb[0].mxu0
    %v2634 = vadd.f32 %v2482, %v2633
    %v2635 = vpop.f32.mrb[0].mxu0
    %2636 = vdwg.mxu0
    %v2637 = vmax.f32 %v2575, 0.0
    %v2638 = vmax.f32 %v2578, 0.0
    %v2639 = vmax.f32 %v2583, 0.0
    %v2640 = vmax.f32 %v2586, 0.0
    %v2641 = vmax.f32 %v2591, 0.0
    %v2642 = vmax.f32 %v2594, 0.0
    %v2643 = vmax.f32 %v2599, 0.0
    %v2644 = vmax.f32 %v2602, 0.0
    %v2645 = vmax.f32 %v2607, 0.0
    %v2646 = vmax.f32 %v2610, 0.0
    %v2647 = vmax.f32 %v2615, 0.0
    %v2648 = vmax.f32 %v2618, 0.0
    %v2649 = vmax.f32 %v2623, 0.0
    %v2650 = vmax.f32 %v2626, 0.0
    %v2651 = vmax.f32 %v2631, 0.0
    %v2652 = vmax.f32 %v2634, 0.0
    %2653 = vxpose.xlu0.b32.start [1/16] %v2637, 128
    %2654 = vxpose.xlu0.b32.cont [2/16] %v2638, 128
    %2655 = vxpose.xlu0.b32.cont [3/16] %v2639, 128
    %2656 = vxpose.xlu0.b32.cont [4/16] %v2640, 128
    %2657 = vxpose.xlu0.b32.cont [5/16] %v2641, 128
    %2658 = vxpose.xlu0.b32.cont [6/16] %v2642, 128
    %2659 = vxpose.xlu0.b32.cont [7/16] %v2643, 128
    %2660 = vxpose.xlu0.b32.cont [8/16] %v2644, 128
    %2661 = vxpose.xlu0.b32.cont [9/16] %v2645, 128
    %2662 = vxpose.xlu0.b32.cont [10/16] %v2646, 128
    %2663 = vxpose.xlu0.b32.cont [11/16] %v2647, 128
    %2664 = vxpose.xlu0.b32.cont [12/16] %v2648, 128
    %2665 = vxpose.xlu0.b32.cont [13/16] %v2649, 128
    %2666 = vxpose.xlu0.b32.cont [14/16] %v2650, 128
    %2667 = vxpose.xlu0.b32.cont [15/16] %v2651, 128
    %2668 = vxpose.xlu0.b32.end [16/16] %v2652, 128
    %v2669 = vpop.trf.xlu0
    %v2670 = vpop.trf.xlu0
    %v2671 = vpop.trf.xlu0
    %v2672 = vpop.trf.xlu0
    %v2673 = vpop.trf.xlu0
    %v2674 = vpop.trf.xlu0
    %v2675 = vpop.trf.xlu0
    %v2676 = vpop.trf.xlu0
    %v2677 = vpop.trf.xlu0
    %v2678 = vpop.trf.xlu0
    %v2679 = vpop.trf.xlu0
    %v2680 = vpop.trf.xlu0
    %v2681 = vpop.trf.xlu0
    %v2682 = vpop.trf.xlu0
    %v2683 = vpop.trf.xlu0
    %v2684 = vpop.trf.xlu0
    %2685 = vst [vmem:[#allocation4] sm:$0xff] %v2669
    // Predicated region
    $region22: #{tpu_custom_call.1} parent=1 // pred_check
      _
    $region23: #{tpu_custom_call.1} parent=1 // pred_check_branch
      %2687 = sbr.rel (0) target = $region25
    $region24: #{tpu_custom_call.1} parent=1 // pred_region
      %s2689 = ssub.s32 128, 128
      %2690 = vsyncadd [#allocation5], %s2689
      %s2692 = sshll.u32 [#allocation4], 4
      %s2693 = int_to_ptr.vmem [resolvable:$true] %s2692
      %2695 = dma.vmem_to_hbm [thread:$0]  %s2693, 128, %s5, [#allocation5]
    $region25: #{tpu_custom_call.1} parent=1 // pred_fallthru
      _
    // Predicated region
    $region26: #{tpu_custom_call.1} parent=1 // pred_check
      _
    $region27: #{tpu_custom_call.1} parent=1 // pred_check_branch
      %2697 = sbr.rel (0) target = $region29
    $region28: #{tpu_custom_call.1} parent=1 // pred_region
      %2698 = dma.done [#allocation5], 128
    $region29: #{tpu_custom_call.1} parent=1 // pred_fallthru
      _
    %2699 = vsyncpa [#allocation5], 1

</llo_original>
